<compile_context>
chip_gen: v7x
topology: tpu7x:2x2x1
jax: 0.10.0
libtpu: 0.0.40
codegen_flags: <defaults>
</compile_context>

<pallas_src>
import functools

import jax
import jax.numpy as jnp
import numpy as np
from jax import lax
from jax.experimental import pallas as pl
from jax.experimental.pallas import tpu as pltpu


# --------------------------------------------------------------------------
# Fused kernel: the whole encoder stack; one (batch tile, layer) per grid step.
# --------------------------------------------------------------------------
def encoder_stack_kernel(
    x_ref, bias_ref,
    wq_ref, bq_ref, wk_ref, bk_ref, wv_ref, bv_ref,
    wo_ref, bo_ref, g1_ref, be1_ref,
    w1_ref, b1_ref, w2_ref, b2_ref, g2_ref, be2_ref,
    out_ref,
    act_ref,                       # VMEM scratch (block_b*S, D) f32, layer-resident
    *, n_heads, head_dim, eps, block_b, seq, hidden,
):
    l = pl.program_id(1)
    n_layers = pl.num_programs(1)
    rows = block_b * seq

    # Load the activation block only at the first layer; later layers reuse the
    # VMEM-resident value (no HBM round trip between layers).
    @pl.when(l == 0)
    def _():
        act_ref[...] = x_ref[...].reshape(rows, hidden)

    x = act_ref[...]                                   # (rows, D) f32
    x_bf = x.astype(jnp.bfloat16)

    wq = wq_ref[0]; wk = wk_ref[0]; wv = wv_ref[0]; wo = wo_ref[0]
    bq = bq_ref[0]; bk = bk_ref[0]; bv = bv_ref[0]; bo = bo_ref[0]

    # ----- QKV projections (MXU, bf16 inputs, f32 accumulation) -----
    q = jnp.dot(x_bf, wq, preferred_element_type=jnp.float32) + bq   # (rows, H*hd)
    k = jnp.dot(x_bf, wk, preferred_element_type=jnp.float32) + bk
    v = jnp.dot(x_bf, wv, preferred_element_type=jnp.float32) + bv

    inv_scale = jnp.float32(1.0 / (head_dim ** 0.5))
    bias = bias_ref[...]                               # (block_b, 1, S) additive mask

    # ----- attention: static head loop, batched over the batch tile -----
    attn = jnp.zeros((rows, hidden), jnp.float32)
    for h in range(n_heads):
        sl = slice(h * head_dim, (h + 1) * head_dim)
        qh = q[:, sl].reshape(block_b, seq, head_dim).astype(jnp.bfloat16)
        kh = k[:, sl].reshape(block_b, seq, head_dim).astype(jnp.bfloat16)
        vh = v[:, sl].reshape(block_b, seq, head_dim).astype(jnp.bfloat16)

        s = jnp.einsum('bqd,bkd->bqk', qh, kh,
                       preferred_element_type=jnp.float32) * inv_scale
        s = s + bias                                   # pad keys -> -1e9
        s = s - jnp.max(s, axis=-1, keepdims=True)     # stable softmax
        e = jnp.exp(s)
        p = e * pl.reciprocal(jnp.sum(e, axis=-1, keepdims=True), approx=True)

        ctx = jnp.einsum('bqk,bkd->bqd', p.astype(jnp.bfloat16), vh,
                         preferred_element_type=jnp.float32)   # (block_b, S, hd)
        # Accumulate the output projection per head (avoids a lane concatenate).
        attn = attn + jnp.dot(
            ctx.reshape(rows, head_dim).astype(jnp.bfloat16), wo[sl, :],
            preferred_element_type=jnp.float32)
    attn = attn + bo

    # ----- residual + LayerNorm 1 (f32) -----
    h1 = x + attn
    mu1 = jnp.mean(h1, axis=-1, keepdims=True)
    c1 = h1 - mu1
    var1 = jnp.mean(c1 * c1, axis=-1, keepdims=True)
    x1 = c1 * lax.rsqrt(var1 + eps) * g1_ref[0] + be1_ref[0]

    # ----- position-wise feed-forward -----
    f = jnp.dot(x1.astype(jnp.bfloat16), w1_ref[0],
                preferred_element_type=jnp.float32) + b1_ref[0]
    f = jnp.maximum(f, 0.0)                            # ReLU
    f = jnp.dot(f.astype(jnp.bfloat16), w2_ref[0],
                preferred_element_type=jnp.float32) + b2_ref[0]

    # ----- residual + LayerNorm 2 (f32) -----
    h2 = f + x1
    mu2 = jnp.mean(h2, axis=-1, keepdims=True)
    c2 = h2 - mu2
    var2 = jnp.mean(c2 * c2, axis=-1, keepdims=True)
    y = c2 * lax.rsqrt(var2 + eps) * g2_ref[0] + be2_ref[0]

    act_ref[...] = y                                   # feed the next layer

    @pl.when(l == n_layers - 1)
    def _():
        out_ref[...] = y.reshape(block_b, seq, hidden)


# --------------------------------------------------------------------------
# Wrapper: one pallas_call for the whole stack.
# --------------------------------------------------------------------------
def encoder_stack_pallas(x, mask_bias, stacked, *, n_heads, head_dim,
                         eps=1e-12, block_b=None):
    B, S, D = x.shape
    L = stacked["wq"].shape[0]
    HD = n_heads * head_dim
    F = stacked["w1"].shape[-1]

    if block_b is None:
        block_b = B if B <= 8 else 8
    assert B % block_b == 0, "batch must be divisible by the batch tile"

    kernel = functools.partial(
        encoder_stack_kernel,
        n_heads=n_heads, head_dim=head_dim, eps=eps,
        block_b=block_b, seq=S, hidden=D,
    )

    def wspec(shape):
        # Per-layer parameter stacked with a leading L dim, indexed by the layer axis.
        return pl.BlockSpec((1,) + shape, lambda b, l, _n=len(shape): (l,) + (0,) * _n)

    in_specs = [
        pl.BlockSpec((block_b, S, D), lambda b, l: (b, 0, 0)),   # x (read at l==0)
        pl.BlockSpec((block_b, 1, S), lambda b, l: (b, 0, 0)),   # additive pad-mask bias
        wspec((D, HD)), wspec((1, HD)),     # Wq, bq
        wspec((D, HD)), wspec((1, HD)),     # Wk, bk
        wspec((D, HD)), wspec((1, HD)),     # Wv, bv
        wspec((HD, D)), wspec((1, D)),      # Wo, bo
        wspec((1, D)), wspec((1, D)),       # LN1 gamma / beta
        wspec((D, F)), wspec((1, F)),       # FFN W1, b1
        wspec((F, D)), wspec((1, D)),       # FFN W2, b2
        wspec((1, D)), wspec((1, D)),       # LN2 gamma / beta
    ]

    # NOTE: default scoped VMEM (32 MiB) is ample here even on v7x; for scaled-up
    # models set pltpu.CompilerParams(vmem_limit_bytes=...) and tile the FFN.
    return pl.pallas_call(
        kernel,
        out_shape=jax.ShapeDtypeStruct((B, S, D), jnp.float32),
        grid=(B // block_b, L),
        in_specs=in_specs,
        out_specs=pl.BlockSpec((block_b, S, D), lambda b, l: (b, 0, 0)),
        scratch_shapes=[pltpu.VMEM((block_b * S, D), jnp.float32)],
        compiler_params=pltpu.CompilerParams(
            dimension_semantics=("parallel", "arbitrary")),
    )(
        x, mask_bias,
        stacked["wq"], stacked["bq"], stacked["wk"], stacked["bk"],
        stacked["wv"], stacked["bv"], stacked["wo"], stacked["bo"],
        stacked["g1"], stacked["be1"],
        stacked["w1"], stacked["b1"], stacked["w2"], stacked["b2"],
        stacked["g2"], stacked["be2"],
    )


# --------------------------------------------------------------------------
# Parameter construction (deterministic) and plain-JAX glue.
# --------------------------------------------------------------------------
def get_positional_encoding_table(max_seq_len, hidden_dim):
    pos = np.arange(max_seq_len, dtype=np.float64)[:, None]
    i = np.arange(hidden_dim, dtype=np.float64)[None, :]
    tbl = pos / np.power(10000.0, 2 * (i // 2) / hidden_dim)
    tbl[:, 0::2] = np.sin(tbl[:, 0::2])
    tbl[:, 1::2] = np.cos(tbl[:, 1::2])
    return jnp.asarray(tbl, dtype=jnp.float32)


def init_params(key, cfg):
    D = cfg["hidden_dim"]
    H = cfg["n_heads"]
    hd = cfg["head_dim"]
    F = cfg["ff_dim"]
    HD = H * hd

    def dense(k, shape, scale=0.05):
        return (scale * jax.random.normal(k, shape)).astype(jnp.float32)

    key, ke = jax.random.split(key)
    layers = []
    for _ in range(cfg["n_layers"]):
        key, *ks = jax.random.split(key, 13)
        lp = {
            "wq": dense(ks[0], (D, HD)), "bq": dense(ks[1], (1, HD)),
            "wk": dense(ks[2], (D, HD)), "bk": dense(ks[3], (1, HD)),
            "wv": dense(ks[4], (D, HD)), "bv": dense(ks[5], (1, HD)),
            "wo": dense(ks[6], (HD, D)), "bo": dense(ks[7], (1, D)),
            "w1": dense(ks[8], (D, F)), "b1": dense(ks[9], (1, F)),
            "w2": dense(ks[10], (F, D)), "b2": dense(ks[11], (1, D)),
            "g1": jnp.ones((1, D), jnp.float32), "be1": jnp.zeros((1, D), jnp.float32),
            "g2": jnp.ones((1, D), jnp.float32), "be2": jnp.zeros((1, D), jnp.float32),
        }
        layers.append(lp)

    # Stack per-layer params with a leading L dim; keep matmul weights in bf16
    # (halves weight DMA), biases / LayerNorm params in f32.
    stacked = {k: jnp.stack([lp[k] for lp in layers], axis=0) for k in layers[0]}
    for k in ("wq", "wk", "wv", "wo", "w1", "w2"):
        stacked[k] = stacked[k].astype(jnp.bfloat16)

    return {
        "src_emb": dense(ke, (cfg["input_dim"], D), scale=0.1),
        "pe_table": get_positional_encoding_table(cfg["max_seq_len"], D),
        "stacked": stacked,
    }


def encoder_forward(tokens, params, cfg):
    """tokens: (B, S) int32 token ids."""
    B, S = tokens.shape
    emb = jnp.take(params["src_emb"], tokens, axis=0)              # (B, S, D)
    pe = params["pe_table"][:S][None, :, :]                        # (1, S, D)
    x = (emb + pe).astype(jnp.float32)                             # combined embedding

    # Additive pad-mask bias over KEYS: (B, 1, S), -1e9 where the key is PAD.
    pad = tokens == cfg["padding_id"]
    mask_bias = jnp.where(pad, jnp.float32(-1e9), jnp.float32(0.0))[:, None, :]

    return encoder_stack_pallas(
        x, mask_bias, params["stacked"],
        n_heads=cfg["n_heads"], head_dim=cfg["head_dim"], eps=1e-12,
    )


# --------------------------------------------------------------------------
if __name__ == "__main__":
    cfg = dict(
        input_dim=50,     # vocab size
        hidden_dim=32,
        n_layers=2,
        n_heads=2,
        head_dim=16,
        ff_dim=64,
        max_seq_len=8,
        padding_id=0,
    )
    B, S = 2, cfg["max_seq_len"]

    key = jax.random.PRNGKey(0)
    key, kp, kt = jax.random.split(key, 3)
    params = init_params(kp, cfg)

    # deterministic token ids with trailing padding
    tokens = jax.random.randint(kt, (B, S), 1, cfg["input_dim"], dtype=jnp.int32)
    tokens = tokens.at[0, -2:].set(cfg["padding_id"])
    tokens = tokens.at[1, -1:].set(cfg["padding_id"])

    out = encoder_forward(tokens, params, cfg)
    out = jax.block_until_ready(out)
    assert out.shape == (B, S, cfg["hidden_dim"])
    assert bool(jnp.all(jnp.isfinite(out)))
    print("KERNEL_OK")
</pallas_src>

<mosaic_0001>
module attributes {stable_mosaic.version = 11 : i64} {
  func.func @encoder_stack_kernel(%arg0: i32, %arg1: i32, %arg2: memref<2x8x32xf32, #tpu.memory_space<vmem>>, %arg3: memref<2x1x8xf32, #tpu.memory_space<vmem>>, %arg4: memref<1x32x32xbf16, #tpu.memory_space<vmem>>, %arg5: memref<1x1x32xf32, #tpu.memory_space<vmem>>, %arg6: memref<1x32x32xbf16, #tpu.memory_space<vmem>>, %arg7: memref<1x1x32xf32, #tpu.memory_space<vmem>>, %arg8: memref<1x32x32xbf16, #tpu.memory_space<vmem>>, %arg9: memref<1x1x32xf32, #tpu.memory_space<vmem>>, %arg10: memref<1x32x32xbf16, #tpu.memory_space<vmem>>, %arg11: memref<1x1x32xf32, #tpu.memory_space<vmem>>, %arg12: memref<1x1x32xf32, #tpu.memory_space<vmem>>, %arg13: memref<1x1x32xf32, #tpu.memory_space<vmem>>, %arg14: memref<1x32x64xbf16, #tpu.memory_space<vmem>>, %arg15: memref<1x1x64xf32, #tpu.memory_space<vmem>>, %arg16: memref<1x64x32xbf16, #tpu.memory_space<vmem>>, %arg17: memref<1x1x32xf32, #tpu.memory_space<vmem>>, %arg18: memref<1x1x32xf32, #tpu.memory_space<vmem>>, %arg19: memref<1x1x32xf32, #tpu.memory_space<vmem>>, %arg20: memref<2x8x32xf32, #tpu.memory_space<vmem>>, %arg21: memref<16x32xf32, #tpu.memory_space<vmem>>) attributes {dimension_semantics = [#tpu.dimension_semantics<parallel>, #tpu.dimension_semantics<arbitrary>], iteration_bounds = array<i64: 1, 2>, scalar_prefetch = 0 : i64, scratch_operands = 1 : i64, tpu.core_type = #tpu.core_type<tc>, window_params = [{transform_indices = @transform_0, window_bounds = array<i64: 2, 8, 32>}, {transform_indices = @transform_1, window_bounds = array<i64: 2, 1, 8>}, {transform_indices = @transform_2, window_bounds = array<i64: 1, 32, 32>}, {transform_indices = @transform_3, window_bounds = array<i64: 1, 1, 32>}, {transform_indices = @transform_4, window_bounds = array<i64: 1, 32, 32>}, {transform_indices = @transform_5, window_bounds = array<i64: 1, 1, 32>}, {transform_indices = @transform_6, window_bounds = array<i64: 1, 32, 32>}, {transform_indices = @transform_7, window_bounds = array<i64: 1, 1, 32>}, {transform_indices = @transform_8, window_bounds = array<i64: 1, 32, 32>}, {transform_indices = @transform_9, window_bounds = array<i64: 1, 1, 32>}, {transform_indices = @transform_10, window_bounds = array<i64: 1, 1, 32>}, {transform_indices = @transform_11, window_bounds = array<i64: 1, 1, 32>}, {transform_indices = @transform_12, window_bounds = array<i64: 1, 32, 64>}, {transform_indices = @transform_13, window_bounds = array<i64: 1, 1, 64>}, {transform_indices = @transform_14, window_bounds = array<i64: 1, 64, 32>}, {transform_indices = @transform_15, window_bounds = array<i64: 1, 1, 32>}, {transform_indices = @transform_16, window_bounds = array<i64: 1, 1, 32>}, {transform_indices = @transform_17, window_bounds = array<i64: 1, 1, 32>}, {transform_indices = @transform_18, window_bounds = array<i64: 2, 8, 32>}]} {
    %c0_i32 = arith.constant 0 : i32
    %0 = arith.cmpi eq, %arg1, %c0_i32 : i32
    %1 = arith.extui %0 : i1 to i32
    %c0_i32_0 = arith.constant 0 : i32
    %2 = arith.cmpi ne, %1, %c0_i32_0 : i32
    scf.if %2 {
      %c0_84 = arith.constant 0 : index
      %c0_85 = arith.constant 0 : index
      %c0_86 = arith.constant 0 : index
      %168 = vector.load %arg2[%c0_84, %c0_85, %c0_86] : memref<2x8x32xf32, #tpu.memory_space<vmem>>, vector<2x8x32xf32>
      %169 = vector.shape_cast %168 : vector<2x8x32xf32> to vector<16x32xf32>
      %c0_87 = arith.constant 0 : index
      %c0_88 = arith.constant 0 : index
      %170 = vector.load %arg21[%c0_87, %c0_88] : memref<16x32xf32, #tpu.memory_space<vmem>>, vector<16x32xf32>
      tpu.vector_store %arg21[%c0_87, %c0_88], %169 {strides = array<i32>} : memref<16x32xf32, #tpu.memory_space<vmem>>, vector<16x32xf32>,
    } else {
    }
    %c0 = arith.constant 0 : index
    %c0_1 = arith.constant 0 : index
    %3 = vector.load %arg21[%c0, %c0_1] : memref<16x32xf32, #tpu.memory_space<vmem>>, vector<16x32xf32>
    %4 = arith.truncf %3 : vector<16x32xf32> to vector<16x32xbf16>
    %c0_2 = arith.constant 0 : index
    %c0_3 = arith.constant 0 : index
    %c0_4 = arith.constant 0 : index
    %5 = vector.load %arg4[%c0_2, %c0_3, %c0_4] : memref<1x32x32xbf16, #tpu.memory_space<vmem>>, vector<1x32x32xbf16>
    %6 = vector.shape_cast %5 : vector<1x32x32xbf16> to vector<32x32xbf16>
    %c0_5 = arith.constant 0 : index
    %c0_6 = arith.constant 0 : index
    %c0_7 = arith.constant 0 : index
    %7 = vector.load %arg6[%c0_5, %c0_6, %c0_7] : memref<1x32x32xbf16, #tpu.memory_space<vmem>>, vector<1x32x32xbf16>
    %8 = vector.shape_cast %7 : vector<1x32x32xbf16> to vector<32x32xbf16>
    %c0_8 = arith.constant 0 : index
    %c0_9 = arith.constant 0 : index
    %c0_10 = arith.constant 0 : index
    %9 = vector.load %arg8[%c0_8, %c0_9, %c0_10] : memref<1x32x32xbf16, #tpu.memory_space<vmem>>, vector<1x32x32xbf16>
    %10 = vector.shape_cast %9 : vector<1x32x32xbf16> to vector<32x32xbf16>
    %c0_11 = arith.constant 0 : index
    %c0_12 = arith.constant 0 : index
    %c0_13 = arith.constant 0 : index
    %11 = vector.load %arg10[%c0_11, %c0_12, %c0_13] : memref<1x32x32xbf16, #tpu.memory_space<vmem>>, vector<1x32x32xbf16>
    %12 = vector.shape_cast %11 : vector<1x32x32xbf16> to vector<32x32xbf16>
    %c0_14 = arith.constant 0 : index
    %c0_15 = arith.constant 0 : index
    %c0_16 = arith.constant 0 : index
    %13 = vector.load %arg5[%c0_14, %c0_15, %c0_16] : memref<1x1x32xf32, #tpu.memory_space<vmem>>, vector<1x1x32xf32>
    %14 = vector.shape_cast %13 : vector<1x1x32xf32> to vector<1x32xf32>
    %c0_17 = arith.constant 0 : index
    %c0_18 = arith.constant 0 : index
    %c0_19 = arith.constant 0 : index
    %15 = vector.load %arg7[%c0_17, %c0_18, %c0_19] : memref<1x1x32xf32, #tpu.memory_space<vmem>>, vector<1x1x32xf32>
    %16 = vector.shape_cast %15 : vector<1x1x32xf32> to vector<1x32xf32>
    %c0_20 = arith.constant 0 : index
    %c0_21 = arith.constant 0 : index
    %c0_22 = arith.constant 0 : index
    %17 = vector.load %arg9[%c0_20, %c0_21, %c0_22] : memref<1x1x32xf32, #tpu.memory_space<vmem>>, vector<1x1x32xf32>
    %18 = vector.shape_cast %17 : vector<1x1x32xf32> to vector<1x32xf32>
    %c0_23 = arith.constant 0 : index
    %c0_24 = arith.constant 0 : index
    %c0_25 = arith.constant 0 : index
    %19 = vector.load %arg11[%c0_23, %c0_24, %c0_25] : memref<1x1x32xf32, #tpu.memory_space<vmem>>, vector<1x1x32xf32>
    %20 = vector.shape_cast %19 : vector<1x1x32xf32> to vector<1x32xf32>
    %cst = arith.constant dense<0.000000e+00> : vector<16x32xf32>
    %21 = tpu.matmul %4, %6, %cst {dimension_numbers = #tpu.dot_dimension_numbers<[1], [0], [0], [1], [0, 0, 1, 1], [], []>} : vector<16x32xbf16>, vector<32x32xbf16>, vector<16x32xf32> -> vector<16x32xf32>
    %22 = vector.broadcast %14 : vector<1x32xf32> to vector<16x32xf32>
    %23 = arith.addf %21, %22 : vector<16x32xf32>
    %cst_26 = arith.constant dense<0.000000e+00> : vector<16x32xf32>
    %24 = tpu.matmul %4, %8, %cst_26 {dimension_numbers = #tpu.dot_dimension_numbers<[1], [0], [0], [1], [0, 0, 1, 1], [], []>} : vector<16x32xbf16>, vector<32x32xbf16>, vector<16x32xf32> -> vector<16x32xf32>
    %25 = vector.broadcast %16 : vector<1x32xf32> to vector<16x32xf32>
    %26 = arith.addf %24, %25 : vector<16x32xf32>
    %cst_27 = arith.constant dense<0.000000e+00> : vector<16x32xf32>
    %27 = tpu.matmul %4, %10, %cst_27 {dimension_numbers = #tpu.dot_dimension_numbers<[1], [0], [0], [1], [0, 0, 1, 1], [], []>} : vector<16x32xbf16>, vector<32x32xbf16>, vector<16x32xf32> -> vector<16x32xf32>
    %28 = vector.broadcast %18 : vector<1x32xf32> to vector<16x32xf32>
    %29 = arith.addf %27, %28 : vector<16x32xf32>
    %c0_28 = arith.constant 0 : index
    %c0_29 = arith.constant 0 : index
    %c0_30 = arith.constant 0 : index
    %30 = vector.load %arg3[%c0_28, %c0_29, %c0_30] : memref<2x1x8xf32, #tpu.memory_space<vmem>>, vector<2x1x8xf32>
    %cst_31 = arith.constant 0.000000e+00 : f32
    %31 = vector.broadcast %cst_31 : f32 to vector<16x32xf32>
    %32 = vector.extract_strided_slice %23 {offsets = [0, 0], sizes = [16, 16], strides = [1, 1]} : vector<16x32xf32> to vector<16x16xf32>
    %33 = vector.shape_cast %32 : vector<16x16xf32> to vector<2x8x16xf32>
    %34 = arith.truncf %33 : vector<2x8x16xf32> to vector<2x8x16xbf16>
    %35 = vector.extract_strided_slice %26 {offsets = [0, 0], sizes = [16, 16], strides = [1, 1]} : vector<16x32xf32> to vector<16x16xf32>
    %36 = vector.shape_cast %35 : vector<16x16xf32> to vector<2x8x16xf32>
    %37 = arith.truncf %36 : vector<2x8x16xf32> to vector<2x8x16xbf16>
    %38 = vector.extract_strided_slice %29 {offsets = [0, 0], sizes = [16, 16], strides = [1, 1]} : vector<16x32xf32> to vector<16x16xf32>
    %39 = vector.shape_cast %38 : vector<16x16xf32> to vector<2x8x16xf32>
    %40 = arith.truncf %39 : vector<2x8x16xf32> to vector<2x8x16xbf16>
    "tpu.trace_start"() <{level = 10 : i32, message = "bqd,bkd->bqk"}> : () -> ()
    %cst_32 = arith.constant dense<0.000000e+00> : vector<2x8x8xf32>
    %41 = tpu.matmul %34, %37, %cst_32 {dimension_numbers = #tpu.dot_dimension_numbers<[2], [2], [1], [1], [0, 0, 0, 1, 1, 1], [0], [0]>} : vector<2x8x16xbf16>, vector<2x8x16xbf16>, vector<2x8x8xf32> -> vector<2x8x8xf32>
    "tpu.trace_stop"() : () -> ()
    %cst_33 = arith.constant 2.500000e-01 : f32
    %42 = vector.broadcast %cst_33 : f32 to vector<2x8x8xf32>
    %43 = arith.mulf %41, %42 : vector<2x8x8xf32>
    %44 = vector.broadcast %30 : vector<2x1x8xf32> to vector<2x8x8xf32>
    %45 = arith.addf %43, %44 : vector<2x8x8xf32>
    %cst_34 = arith.constant dense<0xFF800000> : vector<2x8xf32>
    %46 = vector.multi_reduction <maximumf>, %45, %cst_34 [2] : vector<2x8x8xf32> to vector<2x8xf32>
    %47 = vector.shape_cast %46 : vector<2x8xf32> to vector<2x8x1xf32>
    %48 = vector.broadcast %47 : vector<2x8x1xf32> to vector<2x8x8xf32>
    %49 = arith.subf %45, %48 : vector<2x8x8xf32>
    %50 = math.exp %49 : vector<2x8x8xf32>
    %cst_35 = arith.constant dense<0.000000e+00> : vector<2x8xf32>
    %51 = vector.multi_reduction <add>, %50, %cst_35 [2] : vector<2x8x8xf32> to vector<2x8xf32>
    %52 = vector.shape_cast %51 : vector<2x8xf32> to vector<2x8x1xf32>
    %53 = tpu.reciprocal %52 {approx = true} : vector<2x8x1xf32> -> vector<2x8x1xf32>
    %54 = vector.broadcast %53 : vector<2x8x1xf32> to vector<2x8x8xf32>
    %55 = arith.mulf %50, %54 : vector<2x8x8xf32>
    %56 = arith.truncf %55 : vector<2x8x8xf32> to vector<2x8x8xbf16>
    "tpu.trace_start"() <{level = 10 : i32, message = "bqk,bkd->bqd"}> : () -> ()
    %cst_36 = arith.constant dense<0.000000e+00> : vector<2x8x16xf32>
    %57 = tpu.matmul %56, %40, %cst_36 {dimension_numbers = #tpu.dot_dimension_numbers<[2], [1], [1], [2], [0, 0, 0, 1, 1, 2], [0], [0]>} : vector<2x8x8xbf16>, vector<2x8x16xbf16>, vector<2x8x16xf32> -> vector<2x8x16xf32>
    "tpu.trace_stop"() : () -> ()
    %58 = vector.shape_cast %57 : vector<2x8x16xf32> to vector<16x16xf32>
    %59 = arith.truncf %58 : vector<16x16xf32> to vector<16x16xbf16>
    %60 = vector.extract_strided_slice %12 {offsets = [0, 0], sizes = [16, 32], strides = [1, 1]} : vector<32x32xbf16> to vector<16x32xbf16>
    %cst_37 = arith.constant dense<0.000000e+00> : vector<16x32xf32>
    %61 = tpu.matmul %59, %60, %cst_37 {dimension_numbers = #tpu.dot_dimension_numbers<[1], [0], [0], [1], [0, 0, 1, 1], [], []>} : vector<16x16xbf16>, vector<16x32xbf16>, vector<16x32xf32> -> vector<16x32xf32>
    %62 = arith.addf %31, %61 : vector<16x32xf32>
    %63 = vector.extract_strided_slice %23 {offsets = [0, 16], sizes = [16, 16], strides = [1, 1]} : vector<16x32xf32> to vector<16x16xf32>
    %64 = vector.shape_cast %63 : vector<16x16xf32> to vector<2x8x16xf32>
    %65 = arith.truncf %64 : vector<2x8x16xf32> to vector<2x8x16xbf16>
    %66 = vector.extract_strided_slice %26 {offsets = [0, 16], sizes = [16, 16], strides = [1, 1]} : vector<16x32xf32> to vector<16x16xf32>
    %67 = vector.shape_cast %66 : vector<16x16xf32> to vector<2x8x16xf32>
    %68 = arith.truncf %67 : vector<2x8x16xf32> to vector<2x8x16xbf16>
    %69 = vector.extract_strided_slice %29 {offsets = [0, 16], sizes = [16, 16], strides = [1, 1]} : vector<16x32xf32> to vector<16x16xf32>
    %70 = vector.shape_cast %69 : vector<16x16xf32> to vector<2x8x16xf32>
    %71 = arith.truncf %70 : vector<2x8x16xf32> to vector<2x8x16xbf16>
    "tpu.trace_start"() <{level = 10 : i32, message = "bqd,bkd->bqk"}> : () -> ()
    %cst_38 = arith.constant dense<0.000000e+00> : vector<2x8x8xf32>
    %72 = tpu.matmul %65, %68, %cst_38 {dimension_numbers = #tpu.dot_dimension_numbers<[2], [2], [1], [1], [0, 0, 0, 1, 1, 1], [0], [0]>} : vector<2x8x16xbf16>, vector<2x8x16xbf16>, vector<2x8x8xf32> -> vector<2x8x8xf32>
    "tpu.trace_stop"() : () -> ()
    %cst_39 = arith.constant 2.500000e-01 : f32
    %73 = vector.broadcast %cst_39 : f32 to vector<2x8x8xf32>
    %74 = arith.mulf %72, %73 : vector<2x8x8xf32>
    %75 = vector.broadcast %30 : vector<2x1x8xf32> to vector<2x8x8xf32>
    %76 = arith.addf %74, %75 : vector<2x8x8xf32>
    %cst_40 = arith.constant dense<0xFF800000> : vector<2x8xf32>
    %77 = vector.multi_reduction <maximumf>, %76, %cst_40 [2] : vector<2x8x8xf32> to vector<2x8xf32>
    %78 = vector.shape_cast %77 : vector<2x8xf32> to vector<2x8x1xf32>
    %79 = vector.broadcast %78 : vector<2x8x1xf32> to vector<2x8x8xf32>
    %80 = arith.subf %76, %79 : vector<2x8x8xf32>
    %81 = math.exp %80 : vector<2x8x8xf32>
    %cst_41 = arith.constant dense<0.000000e+00> : vector<2x8xf32>
    %82 = vector.multi_reduction <add>, %81, %cst_41 [2] : vector<2x8x8xf32> to vector<2x8xf32>
    %83 = vector.shape_cast %82 : vector<2x8xf32> to vector<2x8x1xf32>
    %84 = tpu.reciprocal %83 {approx = true} : vector<2x8x1xf32> -> vector<2x8x1xf32>
    %85 = vector.broadcast %84 : vector<2x8x1xf32> to vector<2x8x8xf32>
    %86 = arith.mulf %81, %85 : vector<2x8x8xf32>
    %87 = arith.truncf %86 : vector<2x8x8xf32> to vector<2x8x8xbf16>
    "tpu.trace_start"() <{level = 10 : i32, message = "bqk,bkd->bqd"}> : () -> ()
    %cst_42 = arith.constant dense<0.000000e+00> : vector<2x8x16xf32>
    %88 = tpu.matmul %87, %71, %cst_42 {dimension_numbers = #tpu.dot_dimension_numbers<[2], [1], [1], [2], [0, 0, 0, 1, 1, 2], [0], [0]>} : vector<2x8x8xbf16>, vector<2x8x16xbf16>, vector<2x8x16xf32> -> vector<2x8x16xf32>
    "tpu.trace_stop"() : () -> ()
    %89 = vector.shape_cast %88 : vector<2x8x16xf32> to vector<16x16xf32>
    %90 = arith.truncf %89 : vector<16x16xf32> to vector<16x16xbf16>
    %91 = vector.extract_strided_slice %12 {offsets = [16, 0], sizes = [16, 32], strides = [1, 1]} : vector<32x32xbf16> to vector<16x32xbf16>
    %cst_43 = arith.constant dense<0.000000e+00> : vector<16x32xf32>
    %92 = tpu.matmul %90, %91, %cst_43 {dimension_numbers = #tpu.dot_dimension_numbers<[1], [0], [0], [1], [0, 0, 1, 1], [], []>} : vector<16x16xbf16>, vector<16x32xbf16>, vector<16x32xf32> -> vector<16x32xf32>
    %93 = arith.addf %62, %92 : vector<16x32xf32>
    %94 = vector.broadcast %20 : vector<1x32xf32> to vector<16x32xf32>
    %95 = arith.addf %93, %94 : vector<16x32xf32>
    %96 = arith.addf %3, %95 : vector<16x32xf32>
    %cst_44 = arith.constant dense<0.000000e+00> : vector<16xf32>
    %97 = vector.multi_reduction <add>, %96, %cst_44 [1] : vector<16x32xf32> to vector<16xf32>
    %98 = vector.shape_cast %97 : vector<16xf32> to vector<16x1xf32>
    %cst_45 = arith.constant 3.200000e+01 : f32
    %99 = vector.broadcast %cst_45 : f32 to vector<16x1xf32>
    %100 = arith.divf %98, %99 : vector<16x1xf32>
    %101 = vector.broadcast %100 : vector<16x1xf32> to vector<16x32xf32>
    %102 = arith.subf %96, %101 : vector<16x32xf32>
    %103 = arith.mulf %102, %102 : vector<16x32xf32>
    %cst_46 = arith.constant dense<0.000000e+00> : vector<16xf32>
    %104 = vector.multi_reduction <add>, %103, %cst_46 [1] : vector<16x32xf32> to vector<16xf32>
    %105 = vector.shape_cast %104 : vector<16xf32> to vector<16x1xf32>
    %cst_47 = arith.constant 3.200000e+01 : f32
    %106 = vector.broadcast %cst_47 : f32 to vector<16x1xf32>
    %107 = arith.divf %105, %106 : vector<16x1xf32>
    %cst_48 = arith.constant 9.99999996E-13 : f32
    %108 = vector.broadcast %cst_48 : f32 to vector<16x1xf32>
    %109 = arith.addf %107, %108 : vector<16x1xf32>
    %110 = math.rsqrt %109 : vector<16x1xf32>
    %111 = vector.broadcast %110 : vector<16x1xf32> to vector<16x32xf32>
    %112 = arith.mulf %102, %111 : vector<16x32xf32>
    %c0_49 = arith.constant 0 : index
    %c0_50 = arith.constant 0 : index
    %c0_51 = arith.constant 0 : index
    %113 = vector.load %arg12[%c0_49, %c0_50, %c0_51] : memref<1x1x32xf32, #tpu.memory_space<vmem>>, vector<1x1x32xf32>
    %114 = vector.shape_cast %113 : vector<1x1x32xf32> to vector<1x32xf32>
    %115 = vector.broadcast %114 : vector<1x32xf32> to vector<16x32xf32>
    %116 = arith.mulf %112, %115 : vector<16x32xf32>
    %c0_52 = arith.constant 0 : index
    %c0_53 = arith.constant 0 : index
    %c0_54 = arith.constant 0 : index
    %117 = vector.load %arg13[%c0_52, %c0_53, %c0_54] : memref<1x1x32xf32, #tpu.memory_space<vmem>>, vector<1x1x32xf32>
    %118 = vector.shape_cast %117 : vector<1x1x32xf32> to vector<1x32xf32>
    %119 = vector.broadcast %118 : vector<1x32xf32> to vector<16x32xf32>
    %120 = arith.addf %116, %119 : vector<16x32xf32>
    %121 = arith.truncf %120 : vector<16x32xf32> to vector<16x32xbf16>
    %c0_55 = arith.constant 0 : index
    %c0_56 = arith.constant 0 : index
    %c0_57 = arith.constant 0 : index
    %122 = vector.load %arg14[%c0_55, %c0_56, %c0_57] : memref<1x32x64xbf16, #tpu.memory_space<vmem>>, vector<1x32x64xbf16>
    %123 = vector.shape_cast %122 : vector<1x32x64xbf16> to vector<32x64xbf16>
    %cst_58 = arith.constant dense<0.000000e+00> : vector<16x64xf32>
    %124 = tpu.matmul %121, %123, %cst_58 {dimension_numbers = #tpu.dot_dimension_numbers<[1], [0], [0], [1], [0, 0, 1, 1], [], []>} : vector<16x32xbf16>, vector<32x64xbf16>, vector<16x64xf32> -> vector<16x64xf32>
    %c0_59 = arith.constant 0 : index
    %c0_60 = arith.constant 0 : index
    %c0_61 = arith.constant 0 : index
    %125 = vector.load %arg15[%c0_59, %c0_60, %c0_61] : memref<1x1x64xf32, #tpu.memory_space<vmem>>, vector<1x1x64xf32>
    %126 = vector.shape_cast %125 : vector<1x1x64xf32> to vector<1x64xf32>
    %127 = vector.broadcast %126 : vector<1x64xf32> to vector<16x64xf32>
    %128 = arith.addf %124, %127 : vector<16x64xf32>
    %cst_62 = arith.constant 0.000000e+00 : f32
    %129 = vector.broadcast %cst_62 : f32 to vector<16x64xf32>
    %130 = arith.maximumf %128, %129 : vector<16x64xf32>
    %131 = arith.truncf %130 : vector<16x64xf32> to vector<16x64xbf16>
    %c0_63 = arith.constant 0 : index
    %c0_64 = arith.constant 0 : index
    %c0_65 = arith.constant 0 : index
    %132 = vector.load %arg16[%c0_63, %c0_64, %c0_65] : memref<1x64x32xbf16, #tpu.memory_space<vmem>>, vector<1x64x32xbf16>
    %133 = vector.shape_cast %132 : vector<1x64x32xbf16> to vector<64x32xbf16>
    %cst_66 = arith.constant dense<0.000000e+00> : vector<16x32xf32>
    %134 = tpu.matmul %131, %133, %cst_66 {dimension_numbers = #tpu.dot_dimension_numbers<[1], [0], [0], [1], [0, 0, 1, 1], [], []>} : vector<16x64xbf16>, vector<64x32xbf16>, vector<16x32xf32> -> vector<16x32xf32>
    %c0_67 = arith.constant 0 : index
    %c0_68 = arith.constant 0 : index
    %c0_69 = arith.constant 0 : index
    %135 = vector.load %arg17[%c0_67, %c0_68, %c0_69] : memref<1x1x32xf32, #tpu.memory_space<vmem>>, vector<1x1x32xf32>
    %136 = vector.shape_cast %135 : vector<1x1x32xf32> to vector<1x32xf32>
    %137 = vector.broadcast %136 : vector<1x32xf32> to vector<16x32xf32>
    %138 = arith.addf %134, %137 : vector<16x32xf32>
    %139 = arith.addf %138, %120 : vector<16x32xf32>
    %cst_70 = arith.constant dense<0.000000e+00> : vector<16xf32>
    %140 = vector.multi_reduction <add>, %139, %cst_70 [1] : vector<16x32xf32> to vector<16xf32>
    %141 = vector.shape_cast %140 : vector<16xf32> to vector<16x1xf32>
    %cst_71 = arith.constant 3.200000e+01 : f32
    %142 = vector.broadcast %cst_71 : f32 to vector<16x1xf32>
    %143 = arith.divf %141, %142 : vector<16x1xf32>
    %144 = vector.broadcast %143 : vector<16x1xf32> to vector<16x32xf32>
    %145 = arith.subf %139, %144 : vector<16x32xf32>
    %146 = arith.mulf %145, %145 : vector<16x32xf32>
    %cst_72 = arith.constant dense<0.000000e+00> : vector<16xf32>
    %147 = vector.multi_reduction <add>, %146, %cst_72 [1] : vector<16x32xf32> to vector<16xf32>
    %148 = vector.shape_cast %147 : vector<16xf32> to vector<16x1xf32>
    %cst_73 = arith.constant 3.200000e+01 : f32
    %149 = vector.broadcast %cst_73 : f32 to vector<16x1xf32>
    %150 = arith.divf %148, %149 : vector<16x1xf32>
    %cst_74 = arith.constant 9.99999996E-13 : f32
    %151 = vector.broadcast %cst_74 : f32 to vector<16x1xf32>
    %152 = arith.addf %150, %151 : vector<16x1xf32>
    %153 = math.rsqrt %152 : vector<16x1xf32>
    %154 = vector.broadcast %153 : vector<16x1xf32> to vector<16x32xf32>
    %155 = arith.mulf %145, %154 : vector<16x32xf32>
    %c0_75 = arith.constant 0 : index
    %c0_76 = arith.constant 0 : index
    %c0_77 = arith.constant 0 : index
    %156 = vector.load %arg18[%c0_75, %c0_76, %c0_77] : memref<1x1x32xf32, #tpu.memory_space<vmem>>, vector<1x1x32xf32>
    %157 = vector.shape_cast %156 : vector<1x1x32xf32> to vector<1x32xf32>
    %158 = vector.broadcast %157 : vector<1x32xf32> to vector<16x32xf32>
    %159 = arith.mulf %155, %158 : vector<16x32xf32>
    %c0_78 = arith.constant 0 : index
    %c0_79 = arith.constant 0 : index
    %c0_80 = arith.constant 0 : index
    %160 = vector.load %arg19[%c0_78, %c0_79, %c0_80] : memref<1x1x32xf32, #tpu.memory_space<vmem>>, vector<1x1x32xf32>
    %161 = vector.shape_cast %160 : vector<1x1x32xf32> to vector<1x32xf32>
    %162 = vector.broadcast %161 : vector<1x32xf32> to vector<16x32xf32>
    %163 = arith.addf %159, %162 : vector<16x32xf32>
    %c0_81 = arith.constant 0 : index
    %c0_82 = arith.constant 0 : index
    %164 = vector.load %arg21[%c0_81, %c0_82] : memref<16x32xf32, #tpu.memory_space<vmem>>, vector<16x32xf32>
    tpu.vector_store %arg21[%c0_81, %c0_82], %163 {strides = array<i32>} : memref<16x32xf32, #tpu.memory_space<vmem>>, vector<16x32xf32>,
    %c1_i32 = arith.constant 1 : i32
    %165 = arith.cmpi eq, %arg1, %c1_i32 : i32
    %166 = arith.extui %165 : i1 to i32
    %c0_i32_83 = arith.constant 0 : i32
    %167 = arith.cmpi ne, %166, %c0_i32_83 : i32
    scf.if %167 {
      %168 = vector.shape_cast %163 : vector<16x32xf32> to vector<2x8x32xf32>
      %c0_84 = arith.constant 0 : index
      %c0_85 = arith.constant 0 : index
      %c0_86 = arith.constant 0 : index
      %169 = vector.load %arg20[%c0_84, %c0_85, %c0_86] : memref<2x8x32xf32, #tpu.memory_space<vmem>>, vector<2x8x32xf32>
      tpu.vector_store %arg20[%c0_84, %c0_85, %c0_86], %168 {strides = array<i32>} : memref<2x8x32xf32, #tpu.memory_space<vmem>>, vector<2x8x32xf32>,
    } else {
    }
    return
  }
  func.func @transform_0(%arg0: i32, %arg1: i32) -> (i32, i32, i32) {
    %c0_i32 = arith.constant 0 : i32
    %c0_i32_0 = arith.constant 0 : i32
    %c0_i32_1 = arith.constant 0 : i32
    return %arg0, %c0_i32, %c0_i32_0 : i32, i32, i32
  }
  func.func @transform_1(%arg0: i32, %arg1: i32) -> (i32, i32, i32) {
    %c0_i32 = arith.constant 0 : i32
    %c0_i32_0 = arith.constant 0 : i32
    %c0_i32_1 = arith.constant 0 : i32
    return %arg0, %c0_i32, %c0_i32_0 : i32, i32, i32
  }
  func.func @transform_2(%arg0: i32, %arg1: i32) -> (i32, i32, i32) {
    %c0_i32 = arith.constant 0 : i32
    %c0_i32_0 = arith.constant 0 : i32
    %c0_i32_1 = arith.constant 0 : i32
    return %arg1, %c0_i32, %c0_i32_0 : i32, i32, i32
  }
  func.func @transform_3(%arg0: i32, %arg1: i32) -> (i32, i32, i32) {
    %c0_i32 = arith.constant 0 : i32
    %c0_i32_0 = arith.constant 0 : i32
    %c0_i32_1 = arith.constant 0 : i32
    return %arg1, %c0_i32, %c0_i32_0 : i32, i32, i32
  }
  func.func @transform_4(%arg0: i32, %arg1: i32) -> (i32, i32, i32) {
    %c0_i32 = arith.constant 0 : i32
    %c0_i32_0 = arith.constant 0 : i32
    %c0_i32_1 = arith.constant 0 : i32
    return %arg1, %c0_i32, %c0_i32_0 : i32, i32, i32
  }
  func.func @transform_5(%arg0: i32, %arg1: i32) -> (i32, i32, i32) {
    %c0_i32 = arith.constant 0 : i32
    %c0_i32_0 = arith.constant 0 : i32
    %c0_i32_1 = arith.constant 0 : i32
    return %arg1, %c0_i32, %c0_i32_0 : i32, i32, i32
  }
  func.func @transform_6(%arg0: i32, %arg1: i32) -> (i32, i32, i32) {
    %c0_i32 = arith.constant 0 : i32
    %c0_i32_0 = arith.constant 0 : i32
    %c0_i32_1 = arith.constant 0 : i32
    return %arg1, %c0_i32, %c0_i32_0 : i32, i32, i32
  }
  func.func @transform_7(%arg0: i32, %arg1: i32) -> (i32, i32, i32) {
    %c0_i32 = arith.constant 0 : i32
    %c0_i32_0 = arith.constant 0 : i32
    %c0_i32_1 = arith.constant 0 : i32
    return %arg1, %c0_i32, %c0_i32_0 : i32, i32, i32
  }
  func.func @transform_8(%arg0: i32, %arg1: i32) -> (i32, i32, i32) {
    %c0_i32 = arith.constant 0 : i32
    %c0_i32_0 = arith.constant 0 : i32
    %c0_i32_1 = arith.constant 0 : i32
    return %arg1, %c0_i32, %c0_i32_0 : i32, i32, i32
  }
  func.func @transform_9(%arg0: i32, %arg1: i32) -> (i32, i32, i32) {
    %c0_i32 = arith.constant 0 : i32
    %c0_i32_0 = arith.constant 0 : i32
    %c0_i32_1 = arith.constant 0 : i32
    return %arg1, %c0_i32, %c0_i32_0 : i32, i32, i32
  }
  func.func @transform_10(%arg0: i32, %arg1: i32) -> (i32, i32, i32) {
    %c0_i32 = arith.constant 0 : i32
    %c0_i32_0 = arith.constant 0 : i32
    %c0_i32_1 = arith.constant 0 : i32
    return %arg1, %c0_i32, %c0_i32_0 : i32, i32, i32
  }
  func.func @transform_11(%arg0: i32, %arg1: i32) -> (i32, i32, i32) {
    %c0_i32 = arith.constant 0 : i32
    %c0_i32_0 = arith.constant 0 : i32
    %c0_i32_1 = arith.constant 0 : i32
    return %arg1, %c0_i32, %c0_i32_0 : i32, i32, i32
  }
  func.func @transform_12(%arg0: i32, %arg1: i32) -> (i32, i32, i32) {
    %c0_i32 = arith.constant 0 : i32
    %c0_i32_0 = arith.constant 0 : i32
    %c0_i32_1 = arith.constant 0 : i32
    return %arg1, %c0_i32, %c0_i32_0 : i32, i32, i32
  }
  func.func @transform_13(%arg0: i32, %arg1: i32) -> (i32, i32, i32) {
    %c0_i32 = arith.constant 0 : i32
    %c0_i32_0 = arith.constant 0 : i32
    %c0_i32_1 = arith.constant 0 : i32
    return %arg1, %c0_i32, %c0_i32_0 : i32, i32, i32
  }
  func.func @transform_14(%arg0: i32, %arg1: i32) -> (i32, i32, i32) {
    %c0_i32 = arith.constant 0 : i32
    %c0_i32_0 = arith.constant 0 : i32
    %c0_i32_1 = arith.constant 0 : i32
    return %arg1, %c0_i32, %c0_i32_0 : i32, i32, i32
  }
  func.func @transform_15(%arg0: i32, %arg1: i32) -> (i32, i32, i32) {
    %c0_i32 = arith.constant 0 : i32
    %c0_i32_0 = arith.constant 0 : i32
    %c0_i32_1 = arith.constant 0 : i32
    return %arg1, %c0_i32, %c0_i32_0 : i32, i32, i32
  }
  func.func @transform_16(%arg0: i32, %arg1: i32) -> (i32, i32, i32) {
    %c0_i32 = arith.constant 0 : i32
    %c0_i32_0 = arith.constant 0 : i32
    %c0_i32_1 = arith.constant 0 : i32
    return %arg1, %c0_i32, %c0_i32_0 : i32, i32, i32
  }
  func.func @transform_17(%arg0: i32, %arg1: i32) -> (i32, i32, i32) {
    %c0_i32 = arith.constant 0 : i32
    %c0_i32_0 = arith.constant 0 : i32
    %c0_i32_1 = arith.constant 0 : i32
    return %arg1, %c0_i32, %c0_i32_0 : i32, i32, i32
  }
  func.func @transform_18(%arg0: i32, %arg1: i32) -> (i32, i32, i32) {
    %c0_i32 = arith.constant 0 : i32
    %c0_i32_0 = arith.constant 0 : i32
    %c0_i32_1 = arith.constant 0 : i32
    return %arg0, %c0_i32, %c0_i32_0 : i32, i32, i32
  }
}

</mosaic_0001>

<llo_original>
// kernel: tpu_custom_call.1
$region0: #{tpu_custom_call.1}
  #allocation0 [shape = 'u32[]', space=smem, size = 0x4, offset = 0x4, fixed_abs, tag = 'smem constant byte address 0x4 - core index']
  #allocation1 [shape = 'u32[144,128]{1,0:T(1,128)}', space=vmem, size = 0x12000, scoped, tag = 'internal scratch']
  #allocation2 [shape = 'f32[16,32]{1,0:T(8,128)}', space=vmem, size = 0x2000, scoped, tag = 'scratch operand']
  %s0 = inlined_call_operand.hbm [shape: f32[2,8,32], index: 0, kind: input, shape index: {}]
  %s1 = inlined_call_operand.vmem [shape: f32[2,1,8], index: 1, kind: input, shape index: {}]
  %s2 = inlined_call_operand.vmem [shape: bf16[2,32,32], index: 2, kind: input, shape index: {}]
  %s3 = inlined_call_operand.vmem [shape: f32[2,1,32], index: 3, kind: input, shape index: {}]
  %s4 = inlined_call_operand.vmem [shape: bf16[2,32,32], index: 4, kind: input, shape index: {}]
  %s5 = inlined_call_operand.vmem [shape: f32[2,1,32], index: 5, kind: input, shape index: {}]
  %s6 = inlined_call_operand.vmem [shape: bf16[2,32,32], index: 6, kind: input, shape index: {}]
  %s7 = inlined_call_operand.vmem [shape: f32[2,1,32], index: 7, kind: input, shape index: {}]
  %s8 = inlined_call_operand.hbm [shape: bf16[2,32,32], index: 8, kind: input, shape index: {}]
  %s9 = inlined_call_operand.vmem [shape: f32[2,1,32], index: 9, kind: input, shape index: {}]
  %s10 = inlined_call_operand.vmem [shape: f32[2,1,32], index: 10, kind: input, shape index: {}]
  %s11 = inlined_call_operand.vmem [shape: f32[2,1,32], index: 11, kind: input, shape index: {}]
  %s12 = inlined_call_operand.hbm [shape: bf16[2,32,64], index: 12, kind: input, shape index: {}]
  %s13 = inlined_call_operand.vmem [shape: f32[2,1,64], index: 13, kind: input, shape index: {}]
  %s14 = inlined_call_operand.vmem [shape: bf16[2,64,32], index: 14, kind: input, shape index: {}]
  %s15 = inlined_call_operand.vmem [shape: f32[2,1,32], index: 15, kind: input, shape index: {}]
  %s16 = inlined_call_operand.vmem [shape: f32[2,1,32], index: 16, kind: input, shape index: {}]
  %s17 = inlined_call_operand.vmem [shape: f32[2,1,32], index: 17, kind: input, shape index: {}]
  %s18 = inlined_call_operand.hbm [shape: f32[2,8,32], index: 18, kind: output, shape index: {}]
  %s19 = sld [smem:[#allocation0]]
  $region125: #{tpu_custom_call.1} parent=0
    _
  %s21 = ssub.s32 1, %s19
  %s22 = scalar_select 0, %s21, %s19
  $region1: #{tpu_custom_call.1} parent=0
    #allocation3 [shape = 'u8[8192]{0}', space=vmem, size = 0x2000, scoped, tag = 'input window, operand 0, single buffered']
    #allocation4 [shape = 's32[2]{0}', space=sflag, size = 0x8, scoped, tag = 'scoped memory for tpu_custom_call.1']
    #allocation5 [shape = 's32[2]{0}', space=sflag, size = 0x8, scoped, tag = 'scoped memory for tpu_custom_call.1']
    #allocation6 [shape = 'u8[16384]{0}', space=vmem, size = 0x4000, scoped, tag = 'input window, operand 8']
    #allocation7 [shape = 's32[2]{0}', space=sflag, size = 0x8, scoped, tag = 'scoped memory for tpu_custom_call.1']
    #allocation8 [shape = 'u8[16384]{0}', space=vmem, size = 0x4000, scoped, tag = 'input window, operand 12']
    #allocation9 [shape = 'u8[8192]{0}', space=vmem, size = 0x2000, scoped, tag = 'output window, operand 0, single buffered']
    %23 = vsyncpa [#allocation4], 0
    %24 = vsyncpa [#allocation7], 0
    %s25 = scalar_lea.sflag [#allocation7], 1
    %26 = vsyncpa %s25, 0
    %27 = vsyncpa [#allocation5], 0
    loop: start=0, step=1, limit=4
    $region2: #{tpu_custom_call.1} parent=1 // loop_pre_header
      _
    $region3: #{tpu_custom_call.1} parent=1 // loop_header
      %s29 = sphi 0, %s33
      %p30 = scmp.ge.s32.totalorder %s29, 4
      %s36 = sphi 0, %s48
      %s37 = sphi 0, %s44
      %s38 = sphi 0, %s36
      %s39 = sphi 0, %s37
      %s40 = sphi 0, %s38
      %s41 = sphi 0, %s39
      %s51 = sphi 0, %s53
      %s54 = sphi 0, %s51
      %s55 = sphi 0, %s54
      %s71 = sphi 0, %s55
      %s77 = sphi 0, %s79
      %s80 = sphi 0, %s77
      %s81 = sphi 0, %s80
      %s97 = sphi 0, %s81
      %s103 = sphi 0, %s105
      %s106 = sphi 0, %s103
      %s107 = sphi 0, %s106
      %s123 = sphi 0, %s107
      %s129 = sphi 0, %s131
      %s132 = sphi 0, %s129
      %s133 = sphi 0, %s132
      %s149 = sphi 0, %s133
      %s155 = sphi 0, %s157
      %s158 = sphi 0, %s155
      %s159 = sphi 0, %s158
      %s175 = sphi 0, %s159
      %s181 = sphi 0, %s183
      %s184 = sphi 0, %s181
      %s185 = sphi 0, %s184
      %s201 = sphi 0, %s185
      %s207 = sphi 0, %s209
      %s210 = sphi 0, %s207
      %s211 = sphi 0, %s210
      %s227 = sphi 0, %s211
      %s233 = sphi 0, %s235
      %s236 = sphi 0, %s233
      %s237 = sphi 0, %s236
      %s253 = sphi 0, %s237
      %s259 = sphi 0, %s261
      %s262 = sphi 0, %s259
      %s263 = sphi 0, %s262
      %s279 = sphi 0, %s263
      %s285 = sphi 0, %s287
      %s288 = sphi 0, %s285
      %s289 = sphi 0, %s288
      %s305 = sphi 0, %s289
      %s311 = sphi 0, %s313
      %s314 = sphi 0, %s311
      %s315 = sphi 0, %s314
      %s331 = sphi 0, %s315
      %s337 = sphi 0, %s339
      %s340 = sphi 0, %s337
      %s341 = sphi 0, %s340
      %s357 = sphi 0, %s341
      %s363 = sphi 0, %s365
      %s366 = sphi 0, %s363
      %s367 = sphi 0, %s366
      %s383 = sphi 0, %s367
      %s389 = sphi 0, %s391
      %s392 = sphi 0, %s389
      %s393 = sphi 0, %s392
      %s409 = sphi 0, %s393
      %s415 = sphi 0, %s417
      %s418 = sphi 0, %s415
      %s419 = sphi 0, %s418
      %s435 = sphi 0, %s419
      %s441 = sphi 0, %s443
      %s444 = sphi 0, %s441
      %s445 = sphi 0, %s444
      %s461 = sphi 0, %s445
      %s467 = sphi 0, %s469
      %s470 = sphi 0, %s467
      %s471 = sphi 0, %s470
      %s487 = sphi 0, %s471
      %s493 = sphi 0, %s495
      %s496 = sphi 0, %s493
      %s497 = sphi 0, %s496
      %s513 = sphi 0, %s497
      %s519 = sphi 0, %s521
      %s522 = sphi 0, %s519
      %s523 = sphi 0, %s522
      %s539 = sphi 0, %s523
    $region4: #{tpu_custom_call.1} parent=1 // loop_header_branch
      %32 = sbr.rel (%p30) target = $region8
    $region5: #{tpu_custom_call.1} parent=1 // loop_body
      %s34 = ssub.s32 %s29, 1
      %s35 = ssub.s32 %s29, 2
      %s42 = sadd.s32 1, %s37
      %p43 = scmp.ge.s32.totalorder %s42, 2
      %s44 = scalar_select %p43, 0, %s42
      %s45 = sadd.s32 1, %s36
      %s46 = scalar_select %p43, %s45, %s36
      %p47 = scmp.ge.s32.totalorder %s46, 1
      %s48 = scalar_select %p47, 0, %s46
      %s49 = ssub.s32 %s36, %s48
      %p50 = scmp.eq.s32.totalorder %s49, 0
      %s52 = sadd.s32 %s51, 1
      %s53 = scalar_select %p50, %s51, %s52
      %p56 = pneg %p50
      %p57 = scmp.eq.s32.totalorder %s29, 1
      %p58 = por %p56, %p57
      %p59 = scmp.ne.s32.totalorder %s51, %s54
      %p60 = scmp.eq.s32.totalorder %s29, 0
      %p61 = por %p59, %p60
      %p62 = scmp.ne.s32.totalorder %s51, %s54
      %p63 = scmp.eq.s32.totalorder %s34, 1
      %p64 = por %p62, %p63
      %p65 = scmp.ne.s32.totalorder %s54, %s55
      %p66 = scmp.eq.s32.totalorder %s34, 0
      %p67 = por %p65, %p66
      %p68 = scmp.ne.s32.totalorder %s54, %s55
      %p69 = scmp.eq.s32.totalorder %s35, 1
      %p70 = por %p68, %p69
      %p72 = scmp.ne.s32.totalorder %s55, %s71
      %p73 = scmp.eq.s32.totalorder %s35, 0
      %p74 = por %p72, %p73
      %s75 = ssub.s32 %s36, %s48
      %p76 = scmp.eq.s32.totalorder %s75, 0
      %s78 = sadd.s32 %s77, 1
      %s79 = scalar_select %p76, %s77, %s78
      %p82 = pneg %p76
      %p83 = scmp.eq.s32.totalorder %s29, 1
      %p84 = por %p82, %p83
      %p85 = scmp.ne.s32.totalorder %s77, %s80
      %p86 = scmp.eq.s32.totalorder %s29, 0
      %p87 = por %p85, %p86
      %p88 = scmp.ne.s32.totalorder %s77, %s80
      %p89 = scmp.eq.s32.totalorder %s34, 1
      %p90 = por %p88, %p89
      %p91 = scmp.ne.s32.totalorder %s80, %s81
      %p92 = scmp.eq.s32.totalorder %s34, 0
      %p93 = por %p91, %p92
      %p94 = scmp.ne.s32.totalorder %s80, %s81
      %p95 = scmp.eq.s32.totalorder %s35, 1
      %p96 = por %p94, %p95
      %p98 = scmp.ne.s32.totalorder %s81, %s97
      %p99 = scmp.eq.s32.totalorder %s35, 0
      %p100 = por %p98, %p99
      %s101 = ssub.s32 %s37, %s44
      %p102 = scmp.eq.s32.totalorder %s101, 0
      %s104 = sadd.s32 %s103, 1
      %s105 = scalar_select %p102, %s103, %s104
      %p108 = pneg %p102
      %p109 = scmp.eq.s32.totalorder %s29, 1
      %p110 = por %p108, %p109
      %p111 = scmp.ne.s32.totalorder %s103, %s106
      %p112 = scmp.eq.s32.totalorder %s29, 0
      %p113 = por %p111, %p112
      %p114 = scmp.ne.s32.totalorder %s103, %s106
      %p115 = scmp.eq.s32.totalorder %s34, 1
      %p116 = por %p114, %p115
      %p117 = scmp.ne.s32.totalorder %s106, %s107
      %p118 = scmp.eq.s32.totalorder %s34, 0
      %p119 = por %p117, %p118
      %p120 = scmp.ne.s32.totalorder %s106, %s107
      %p121 = scmp.eq.s32.totalorder %s35, 1
      %p122 = por %p120, %p121
      %p124 = scmp.ne.s32.totalorder %s107, %s123
      %p125 = scmp.eq.s32.totalorder %s35, 0
      %p126 = por %p124, %p125
      %s127 = ssub.s32 %s37, %s44
      %p128 = scmp.eq.s32.totalorder %s127, 0
      %s130 = sadd.s32 %s129, 1
      %s131 = scalar_select %p128, %s129, %s130
      %p134 = pneg %p128
      %p135 = scmp.eq.s32.totalorder %s29, 1
      %p136 = por %p134, %p135
      %p137 = scmp.ne.s32.totalorder %s129, %s132
      %p138 = scmp.eq.s32.totalorder %s29, 0
      %p139 = por %p137, %p138
      %p140 = scmp.ne.s32.totalorder %s129, %s132
      %p141 = scmp.eq.s32.totalorder %s34, 1
      %p142 = por %p140, %p141
      %p143 = scmp.ne.s32.totalorder %s132, %s133
      %p144 = scmp.eq.s32.totalorder %s34, 0
      %p145 = por %p143, %p144
      %p146 = scmp.ne.s32.totalorder %s132, %s133
      %p147 = scmp.eq.s32.totalorder %s35, 1
      %p148 = por %p146, %p147
      %p150 = scmp.ne.s32.totalorder %s133, %s149
      %p151 = scmp.eq.s32.totalorder %s35, 0
      %p152 = por %p150, %p151
      %s153 = ssub.s32 %s37, %s44
      %p154 = scmp.eq.s32.totalorder %s153, 0
      %s156 = sadd.s32 %s155, 1
      %s157 = scalar_select %p154, %s155, %s156
      %p160 = pneg %p154
      %p161 = scmp.eq.s32.totalorder %s29, 1
      %p162 = por %p160, %p161
      %p163 = scmp.ne.s32.totalorder %s155, %s158
      %p164 = scmp.eq.s32.totalorder %s29, 0
      %p165 = por %p163, %p164
      %p166 = scmp.ne.s32.totalorder %s155, %s158
      %p167 = scmp.eq.s32.totalorder %s34, 1
      %p168 = por %p166, %p167
      %p169 = scmp.ne.s32.totalorder %s158, %s159
      %p170 = scmp.eq.s32.totalorder %s34, 0
      %p171 = por %p169, %p170
      %p172 = scmp.ne.s32.totalorder %s158, %s159
      %p173 = scmp.eq.s32.totalorder %s35, 1
      %p174 = por %p172, %p173
      %p176 = scmp.ne.s32.totalorder %s159, %s175
      %p177 = scmp.eq.s32.totalorder %s35, 0
      %p178 = por %p176, %p177
      %s179 = ssub.s32 %s37, %s44
      %p180 = scmp.eq.s32.totalorder %s179, 0
      %s182 = sadd.s32 %s181, 1
      %s183 = scalar_select %p180, %s181, %s182
      %p186 = pneg %p180
      %p187 = scmp.eq.s32.totalorder %s29, 1
      %p188 = por %p186, %p187
      %p189 = scmp.ne.s32.totalorder %s181, %s184
      %p190 = scmp.eq.s32.totalorder %s29, 0
      %p191 = por %p189, %p190
      %p192 = scmp.ne.s32.totalorder %s181, %s184
      %p193 = scmp.eq.s32.totalorder %s34, 1
      %p194 = por %p192, %p193
      %p195 = scmp.ne.s32.totalorder %s184, %s185
      %p196 = scmp.eq.s32.totalorder %s34, 0
      %p197 = por %p195, %p196
      %p198 = scmp.ne.s32.totalorder %s184, %s185
      %p199 = scmp.eq.s32.totalorder %s35, 1
      %p200 = por %p198, %p199
      %p202 = scmp.ne.s32.totalorder %s185, %s201
      %p203 = scmp.eq.s32.totalorder %s35, 0
      %p204 = por %p202, %p203
      %s205 = ssub.s32 %s37, %s44
      %p206 = scmp.eq.s32.totalorder %s205, 0
      %s208 = sadd.s32 %s207, 1
      %s209 = scalar_select %p206, %s207, %s208
      %p212 = pneg %p206
      %p213 = scmp.eq.s32.totalorder %s29, 1
      %p214 = por %p212, %p213
      %p215 = scmp.ne.s32.totalorder %s207, %s210
      %p216 = scmp.eq.s32.totalorder %s29, 0
      %p217 = por %p215, %p216
      %p218 = scmp.ne.s32.totalorder %s207, %s210
      %p219 = scmp.eq.s32.totalorder %s34, 1
      %p220 = por %p218, %p219
      %p221 = scmp.ne.s32.totalorder %s210, %s211
      %p222 = scmp.eq.s32.totalorder %s34, 0
      %p223 = por %p221, %p222
      %p224 = scmp.ne.s32.totalorder %s210, %s211
      %p225 = scmp.eq.s32.totalorder %s35, 1
      %p226 = por %p224, %p225
      %p228 = scmp.ne.s32.totalorder %s211, %s227
      %p229 = scmp.eq.s32.totalorder %s35, 0
      %p230 = por %p228, %p229
      %s231 = ssub.s32 %s37, %s44
      %p232 = scmp.eq.s32.totalorder %s231, 0
      %s234 = sadd.s32 %s233, 1
      %s235 = scalar_select %p232, %s233, %s234
      %p238 = pneg %p232
      %p239 = scmp.eq.s32.totalorder %s29, 1
      %p240 = por %p238, %p239
      %p241 = scmp.ne.s32.totalorder %s233, %s236
      %p242 = scmp.eq.s32.totalorder %s29, 0
      %p243 = por %p241, %p242
      %p244 = scmp.ne.s32.totalorder %s233, %s236
      %p245 = scmp.eq.s32.totalorder %s34, 1
      %p246 = por %p244, %p245
      %p247 = scmp.ne.s32.totalorder %s236, %s237
      %p248 = scmp.eq.s32.totalorder %s34, 0
      %p249 = por %p247, %p248
      %p250 = scmp.ne.s32.totalorder %s236, %s237
      %p251 = scmp.eq.s32.totalorder %s35, 1
      %p252 = por %p250, %p251
      %p254 = scmp.ne.s32.totalorder %s237, %s253
      %p255 = scmp.eq.s32.totalorder %s35, 0
      %p256 = por %p254, %p255
      %s257 = ssub.s32 %s37, %s44
      %p258 = scmp.eq.s32.totalorder %s257, 0
      %s260 = sadd.s32 %s259, 1
      %s261 = scalar_select %p258, %s259, %s260
      %p264 = pneg %p258
      %p265 = scmp.eq.s32.totalorder %s29, 1
      %p266 = por %p264, %p265
      %p267 = scmp.ne.s32.totalorder %s259, %s262
      %p268 = scmp.eq.s32.totalorder %s29, 0
      %p269 = por %p267, %p268
      %p270 = scmp.ne.s32.totalorder %s259, %s262
      %p271 = scmp.eq.s32.totalorder %s34, 1
      %p272 = por %p270, %p271
      %p273 = scmp.ne.s32.totalorder %s262, %s263
      %p274 = scmp.eq.s32.totalorder %s34, 0
      %p275 = por %p273, %p274
      %p276 = scmp.ne.s32.totalorder %s262, %s263
      %p277 = scmp.eq.s32.totalorder %s35, 1
      %p278 = por %p276, %p277
      %p280 = scmp.ne.s32.totalorder %s263, %s279
      %p281 = scmp.eq.s32.totalorder %s35, 0
      %p282 = por %p280, %p281
      %s283 = ssub.s32 %s37, %s44
      %p284 = scmp.eq.s32.totalorder %s283, 0
      %s286 = sadd.s32 %s285, 1
      %s287 = scalar_select %p284, %s285, %s286
      %p290 = pneg %p284
      %p291 = scmp.eq.s32.totalorder %s29, 1
      %p292 = por %p290, %p291
      %p293 = scmp.ne.s32.totalorder %s285, %s288
      %p294 = scmp.eq.s32.totalorder %s29, 0
      %p295 = por %p293, %p294
      %p296 = scmp.ne.s32.totalorder %s285, %s288
      %p297 = scmp.eq.s32.totalorder %s34, 1
      %p298 = por %p296, %p297
      %p299 = scmp.ne.s32.totalorder %s288, %s289
      %p300 = scmp.eq.s32.totalorder %s34, 0
      %p301 = por %p299, %p300
      %p302 = scmp.ne.s32.totalorder %s288, %s289
      %p303 = scmp.eq.s32.totalorder %s35, 1
      %p304 = por %p302, %p303
      %p306 = scmp.ne.s32.totalorder %s289, %s305
      %p307 = scmp.eq.s32.totalorder %s35, 0
      %p308 = por %p306, %p307
      %s309 = ssub.s32 %s37, %s44
      %p310 = scmp.eq.s32.totalorder %s309, 0
      %s312 = sadd.s32 %s311, 1
      %s313 = scalar_select %p310, %s311, %s312
      %p316 = pneg %p310
      %p317 = scmp.eq.s32.totalorder %s29, 1
      %p318 = por %p316, %p317
      %p319 = scmp.ne.s32.totalorder %s311, %s314
      %p320 = scmp.eq.s32.totalorder %s29, 0
      %p321 = por %p319, %p320
      %p322 = scmp.ne.s32.totalorder %s311, %s314
      %p323 = scmp.eq.s32.totalorder %s34, 1
      %p324 = por %p322, %p323
      %p325 = scmp.ne.s32.totalorder %s314, %s315
      %p326 = scmp.eq.s32.totalorder %s34, 0
      %p327 = por %p325, %p326
      %p328 = scmp.ne.s32.totalorder %s314, %s315
      %p329 = scmp.eq.s32.totalorder %s35, 1
      %p330 = por %p328, %p329
      %p332 = scmp.ne.s32.totalorder %s315, %s331
      %p333 = scmp.eq.s32.totalorder %s35, 0
      %p334 = por %p332, %p333
      %s335 = ssub.s32 %s37, %s44
      %p336 = scmp.eq.s32.totalorder %s335, 0
      %s338 = sadd.s32 %s337, 1
      %s339 = scalar_select %p336, %s337, %s338
      %p342 = pneg %p336
      %p343 = scmp.eq.s32.totalorder %s29, 1
      %p344 = por %p342, %p343
      %p345 = scmp.ne.s32.totalorder %s337, %s340
      %p346 = scmp.eq.s32.totalorder %s29, 0
      %p347 = por %p345, %p346
      %p348 = scmp.ne.s32.totalorder %s337, %s340
      %p349 = scmp.eq.s32.totalorder %s34, 1
      %p350 = por %p348, %p349
      %p351 = scmp.ne.s32.totalorder %s340, %s341
      %p352 = scmp.eq.s32.totalorder %s34, 0
      %p353 = por %p351, %p352
      %p354 = scmp.ne.s32.totalorder %s340, %s341
      %p355 = scmp.eq.s32.totalorder %s35, 1
      %p356 = por %p354, %p355
      %p358 = scmp.ne.s32.totalorder %s341, %s357
      %p359 = scmp.eq.s32.totalorder %s35, 0
      %p360 = por %p358, %p359
      %s361 = ssub.s32 %s37, %s44
      %p362 = scmp.eq.s32.totalorder %s361, 0
      %s364 = sadd.s32 %s363, 1
      %s365 = scalar_select %p362, %s363, %s364
      %p368 = pneg %p362
      %p369 = scmp.eq.s32.totalorder %s29, 1
      %p370 = por %p368, %p369
      %p371 = scmp.ne.s32.totalorder %s363, %s366
      %p372 = scmp.eq.s32.totalorder %s29, 0
      %p373 = por %p371, %p372
      %p374 = scmp.ne.s32.totalorder %s363, %s366
      %p375 = scmp.eq.s32.totalorder %s34, 1
      %p376 = por %p374, %p375
      %p377 = scmp.ne.s32.totalorder %s366, %s367
      %p378 = scmp.eq.s32.totalorder %s34, 0
      %p379 = por %p377, %p378
      %p380 = scmp.ne.s32.totalorder %s366, %s367
      %p381 = scmp.eq.s32.totalorder %s35, 1
      %p382 = por %p380, %p381
      %p384 = scmp.ne.s32.totalorder %s367, %s383
      %p385 = scmp.eq.s32.totalorder %s35, 0
      %p386 = por %p384, %p385
      %s387 = ssub.s32 %s37, %s44
      %p388 = scmp.eq.s32.totalorder %s387, 0
      %s390 = sadd.s32 %s389, 1
      %s391 = scalar_select %p388, %s389, %s390
      %p394 = pneg %p388
      %p395 = scmp.eq.s32.totalorder %s29, 1
      %p396 = por %p394, %p395
      %p397 = scmp.ne.s32.totalorder %s389, %s392
      %p398 = scmp.eq.s32.totalorder %s29, 0
      %p399 = por %p397, %p398
      %p400 = scmp.ne.s32.totalorder %s389, %s392
      %p401 = scmp.eq.s32.totalorder %s34, 1
      %p402 = por %p400, %p401
      %p403 = scmp.ne.s32.totalorder %s392, %s393
      %p404 = scmp.eq.s32.totalorder %s34, 0
      %p405 = por %p403, %p404
      %p406 = scmp.ne.s32.totalorder %s392, %s393
      %p407 = scmp.eq.s32.totalorder %s35, 1
      %p408 = por %p406, %p407
      %p410 = scmp.ne.s32.totalorder %s393, %s409
      %p411 = scmp.eq.s32.totalorder %s35, 0
      %p412 = por %p410, %p411
      %s413 = ssub.s32 %s37, %s44
      %p414 = scmp.eq.s32.totalorder %s413, 0
      %s416 = sadd.s32 %s415, 1
      %s417 = scalar_select %p414, %s415, %s416
      %p420 = pneg %p414
      %p421 = scmp.eq.s32.totalorder %s29, 1
      %p422 = por %p420, %p421
      %p423 = scmp.ne.s32.totalorder %s415, %s418
      %p424 = scmp.eq.s32.totalorder %s29, 0
      %p425 = por %p423, %p424
      %p426 = scmp.ne.s32.totalorder %s415, %s418
      %p427 = scmp.eq.s32.totalorder %s34, 1
      %p428 = por %p426, %p427
      %p429 = scmp.ne.s32.totalorder %s418, %s419
      %p430 = scmp.eq.s32.totalorder %s34, 0
      %p431 = por %p429, %p430
      %p432 = scmp.ne.s32.totalorder %s418, %s419
      %p433 = scmp.eq.s32.totalorder %s35, 1
      %p434 = por %p432, %p433
      %p436 = scmp.ne.s32.totalorder %s419, %s435
      %p437 = scmp.eq.s32.totalorder %s35, 0
      %p438 = por %p436, %p437
      %s439 = ssub.s32 %s37, %s44
      %p440 = scmp.eq.s32.totalorder %s439, 0
      %s442 = sadd.s32 %s441, 1
      %s443 = scalar_select %p440, %s441, %s442
      %p446 = pneg %p440
      %p447 = scmp.eq.s32.totalorder %s29, 1
      %p448 = por %p446, %p447
      %p449 = scmp.ne.s32.totalorder %s441, %s444
      %p450 = scmp.eq.s32.totalorder %s29, 0
      %p451 = por %p449, %p450
      %p452 = scmp.ne.s32.totalorder %s441, %s444
      %p453 = scmp.eq.s32.totalorder %s34, 1
      %p454 = por %p452, %p453
      %p455 = scmp.ne.s32.totalorder %s444, %s445
      %p456 = scmp.eq.s32.totalorder %s34, 0
      %p457 = por %p455, %p456
      %p458 = scmp.ne.s32.totalorder %s444, %s445
      %p459 = scmp.eq.s32.totalorder %s35, 1
      %p460 = por %p458, %p459
      %p462 = scmp.ne.s32.totalorder %s445, %s461
      %p463 = scmp.eq.s32.totalorder %s35, 0
      %p464 = por %p462, %p463
      %s465 = ssub.s32 %s37, %s44
      %p466 = scmp.eq.s32.totalorder %s465, 0
      %s468 = sadd.s32 %s467, 1
      %s469 = scalar_select %p466, %s467, %s468
      %p472 = pneg %p466
      %p473 = scmp.eq.s32.totalorder %s29, 1
      %p474 = por %p472, %p473
      %p475 = scmp.ne.s32.totalorder %s467, %s470
      %p476 = scmp.eq.s32.totalorder %s29, 0
      %p477 = por %p475, %p476
      %p478 = scmp.ne.s32.totalorder %s467, %s470
      %p479 = scmp.eq.s32.totalorder %s34, 1
      %p480 = por %p478, %p479
      %p481 = scmp.ne.s32.totalorder %s470, %s471
      %p482 = scmp.eq.s32.totalorder %s34, 0
      %p483 = por %p481, %p482
      %p484 = scmp.ne.s32.totalorder %s470, %s471
      %p485 = scmp.eq.s32.totalorder %s35, 1
      %p486 = por %p484, %p485
      %p488 = scmp.ne.s32.totalorder %s471, %s487
      %p489 = scmp.eq.s32.totalorder %s35, 0
      %p490 = por %p488, %p489
      %s491 = ssub.s32 %s37, %s44
      %p492 = scmp.eq.s32.totalorder %s491, 0
      %s494 = sadd.s32 %s493, 1
      %s495 = scalar_select %p492, %s493, %s494
      %p498 = pneg %p492
      %p499 = scmp.eq.s32.totalorder %s29, 1
      %p500 = por %p498, %p499
      %p501 = scmp.ne.s32.totalorder %s493, %s496
      %p502 = scmp.eq.s32.totalorder %s29, 0
      %p503 = por %p501, %p502
      %p504 = scmp.ne.s32.totalorder %s493, %s496
      %p505 = scmp.eq.s32.totalorder %s34, 1
      %p506 = por %p504, %p505
      %p507 = scmp.ne.s32.totalorder %s496, %s497
      %p508 = scmp.eq.s32.totalorder %s34, 0
      %p509 = por %p507, %p508
      %p510 = scmp.ne.s32.totalorder %s496, %s497
      %p511 = scmp.eq.s32.totalorder %s35, 1
      %p512 = por %p510, %p511
      %p514 = scmp.ne.s32.totalorder %s497, %s513
      %p515 = scmp.eq.s32.totalorder %s35, 0
      %p516 = por %p514, %p515
      %s517 = ssub.s32 %s36, %s48
      %p518 = scmp.eq.s32.totalorder %s517, 0
      %s520 = sadd.s32 %s519, 1
      %s521 = scalar_select %p518, %s519, %s520
      %p524 = pneg %p518
      %p525 = scmp.eq.s32.totalorder %s29, 1
      %p526 = por %p524, %p525
      %p527 = scmp.ne.s32.totalorder %s519, %s522
      %p528 = scmp.eq.s32.totalorder %s29, 0
      %p529 = por %p527, %p528
      %p530 = scmp.ne.s32.totalorder %s519, %s522
      %p531 = scmp.eq.s32.totalorder %s34, 1
      %p532 = por %p530, %p531
      %p533 = scmp.ne.s32.totalorder %s522, %s523
      %p534 = scmp.eq.s32.totalorder %s34, 0
      %p535 = por %p533, %p534
      %p536 = scmp.ne.s32.totalorder %s522, %s523
      %p537 = scmp.eq.s32.totalorder %s35, 1
      %p538 = por %p536, %p537
      %p540 = scmp.ne.s32.totalorder %s523, %s539
      %p541 = scmp.eq.s32.totalorder %s35, 0
      %p542 = por %p540, %p541
      %p543 = scmp.le.s32.totalorder 1, %s29
      %p544 = scmp.lt.s32.totalorder %s29, 3
      %p545 = pnand %p543, %p544
      %p546 = pneg %p545
      // Predicated region
      $region9: #{tpu_custom_call.1} parent=5 // pred_check
        _
      $region10: #{tpu_custom_call.1} parent=5 // pred_check_branch
        %548 = sbr.rel (%p545) target = $region12
      $region11: #{tpu_custom_call.1} parent=5 // pred_region
        %s549 = ssub.s32 %s29, 1
        // Predicated region
        $region13: #{tpu_custom_call.1} parent=11 // pred_check
          %p550 = pneg %p67
        $region14: #{tpu_custom_call.1} parent=11 // pred_check_branch
          %552 = sbr.rel (%p550) target = $region16
        $region15: #{tpu_custom_call.1} parent=11 // pred_region
          %s553 = smul.u32 2, %s38
          %s555 = ssub.s32 256, 256
          %556 = vsyncadd [#allocation4], %s555
          %s557 = smul.addr %s553, 128
          %s558 = scalar_lea.hbm %s0, %s557
          %s559 = sshll.u32 [#allocation3], 4
          %s560 = int_to_ptr.vmem [resolvable:$true] %s559
          %565 = dma.hbm_to_vmem [thread:$0]  %s558, 256, %s560, [#allocation4], 128, 128, 8
        $region16: #{tpu_custom_call.1} parent=11 // pred_fallthru
          _
        // Predicated region
        $region17: #{tpu_custom_call.1} parent=11 // pred_check
          %p566 = pneg %p93
        $region18: #{tpu_custom_call.1} parent=11 // pred_check_branch
          %568 = sbr.rel (%p566) target = $region20
        $region19: #{tpu_custom_call.1} parent=11 // pred_region
          %s569 = smul.u32 2, %s38
          %p570 = scmp.lt.s32.totalorder %s569, 1
          %s571 = scalar_select %p570, %s569, 1
          %s572 = scalar_lea.vmem %s1, %s571
          %s573 = smul.u32 2, %s38
        $region20: #{tpu_custom_call.1} parent=11 // pred_fallthru
          _
      $region12: #{tpu_custom_call.1} parent=5 // pred_fallthru
        _
      %p574 = scmp.lt.s32.totalorder %s29, 2
      // Predicated region
      $region21: #{tpu_custom_call.1} parent=5 // pred_check
        %p575 = pneg %p574
      $region22: #{tpu_custom_call.1} parent=5 // pred_check_branch
        %577 = sbr.rel (%p575) target = $region24
      $region23: #{tpu_custom_call.1} parent=5 // pred_region
        // Predicated region
        $region25: #{tpu_custom_call.1} parent=23 // pred_check
          %p578 = pneg %p113
        $region26: #{tpu_custom_call.1} parent=23 // pred_check_branch
          %580 = sbr.rel (%p578) target = $region28
        $region27: #{tpu_custom_call.1} parent=23 // pred_region
          %p581 = scmp.lt.s32.totalorder %s37, 1
          %s582 = scalar_select %p581, %s37, 1
          %s583 = smul.addr %s582, 4
          %s584 = smul.addr %s583, 4
          %s585 = scalar_lea.vmem %s2, %s584
        $region28: #{tpu_custom_call.1} parent=23 // pred_fallthru
          _
        // Predicated region
        $region29: #{tpu_custom_call.1} parent=23 // pred_check
          %p586 = pneg %p139
        $region30: #{tpu_custom_call.1} parent=23 // pred_check_branch
          %588 = sbr.rel (%p586) target = $region32
        $region31: #{tpu_custom_call.1} parent=23 // pred_region
          %p589 = scmp.lt.s32.totalorder %s37, 1
          %s590 = scalar_select %p589, %s37, 1
          %s591 = scalar_lea.vmem %s3, %s590
        $region32: #{tpu_custom_call.1} parent=23 // pred_fallthru
          _
        // Predicated region
        $region33: #{tpu_custom_call.1} parent=23 // pred_check
          %p592 = pneg %p165
        $region34: #{tpu_custom_call.1} parent=23 // pred_check_branch
          %594 = sbr.rel (%p592) target = $region36
        $region35: #{tpu_custom_call.1} parent=23 // pred_region
          %p595 = scmp.lt.s32.totalorder %s37, 1
          %s596 = scalar_select %p595, %s37, 1
          %s597 = smul.addr %s596, 4
          %s598 = smul.addr %s597, 4
          %s599 = scalar_lea.vmem %s4, %s598
        $region36: #{tpu_custom_call.1} parent=23 // pred_fallthru
          _
        // Predicated region
        $region37: #{tpu_custom_call.1} parent=23 // pred_check
          %p600 = pneg %p191
        $region38: #{tpu_custom_call.1} parent=23 // pred_check_branch
          %602 = sbr.rel (%p600) target = $region40
        $region39: #{tpu_custom_call.1} parent=23 // pred_region
          %p603 = scmp.lt.s32.totalorder %s37, 1
          %s604 = scalar_select %p603, %s37, 1
          %s605 = scalar_lea.vmem %s5, %s604
        $region40: #{tpu_custom_call.1} parent=23 // pred_fallthru
          _
        // Predicated region
        $region41: #{tpu_custom_call.1} parent=23 // pred_check
          %p606 = pneg %p217
        $region42: #{tpu_custom_call.1} parent=23 // pred_check_branch
          %608 = sbr.rel (%p606) target = $region44
        $region43: #{tpu_custom_call.1} parent=23 // pred_region
          %p609 = scmp.lt.s32.totalorder %s37, 1
          %s610 = scalar_select %p609, %s37, 1
          %s611 = smul.addr %s610, 4
          %s612 = smul.addr %s611, 4
          %s613 = scalar_lea.vmem %s6, %s612
        $region44: #{tpu_custom_call.1} parent=23 // pred_fallthru
          _
        // Predicated region
        $region45: #{tpu_custom_call.1} parent=23 // pred_check
          %p614 = pneg %p243
        $region46: #{tpu_custom_call.1} parent=23 // pred_check_branch
          %616 = sbr.rel (%p614) target = $region48
        $region47: #{tpu_custom_call.1} parent=23 // pred_region
          %p617 = scmp.lt.s32.totalorder %s37, 1
          %s618 = scalar_select %p617, %s37, 1
          %s619 = scalar_lea.vmem %s7, %s618
        $region48: #{tpu_custom_call.1} parent=23 // pred_fallthru
          _
        // Predicated region
        $region49: #{tpu_custom_call.1} parent=23 // pred_check
          %p620 = pneg %p269
        $region50: #{tpu_custom_call.1} parent=23 // pred_check_branch
          %622 = sbr.rel (%p620) target = $region52
        $region51: #{tpu_custom_call.1} parent=23 // pred_region
          %s623 = sand.u32 %s29, 1
          %s624 = scalar_lea.sflag [#allocation7], %s623
          %s625 = sand.u32 %s259, 1
          %s626 = smul.addr %s625, 16
          %s627 = scalar_lea.vmem [#allocation6], %s626
          %s629 = ssub.s32 256, 256
          %630 = vsyncadd %s624, %s629
          %s631 = smul.addr %s37, 4
          %s632 = smul.addr %s631, 64
          %s633 = scalar_lea.hbm %s8, %s632
          %s634 = sshll.u32 %s627, 4
          %s635 = int_to_ptr.vmem [resolvable:$true] %s634
          %640 = dma.hbm_to_vmem [thread:$0]  %s633, 256, %s635, %s624, 64, 64, 4
        $region52: #{tpu_custom_call.1} parent=23 // pred_fallthru
          _
        // Predicated region
        $region53: #{tpu_custom_call.1} parent=23 // pred_check
          %p641 = pneg %p295
        $region54: #{tpu_custom_call.1} parent=23 // pred_check_branch
          %643 = sbr.rel (%p641) target = $region56
        $region55: #{tpu_custom_call.1} parent=23 // pred_region
          %p644 = scmp.lt.s32.totalorder %s37, 1
          %s645 = scalar_select %p644, %s37, 1
          %s646 = scalar_lea.vmem %s9, %s645
        $region56: #{tpu_custom_call.1} parent=23 // pred_fallthru
          _
        // Predicated region
        $region57: #{tpu_custom_call.1} parent=23 // pred_check
          %p647 = pneg %p321
        $region58: #{tpu_custom_call.1} parent=23 // pred_check_branch
          %649 = sbr.rel (%p647) target = $region60
        $region59: #{tpu_custom_call.1} parent=23 // pred_region
          %p650 = scmp.lt.s32.totalorder %s37, 1
          %s651 = scalar_select %p650, %s37, 1
          %s652 = scalar_lea.vmem %s10, %s651
        $region60: #{tpu_custom_call.1} parent=23 // pred_fallthru
          _
        // Predicated region
        $region61: #{tpu_custom_call.1} parent=23 // pred_check
          %p653 = pneg %p347
        $region62: #{tpu_custom_call.1} parent=23 // pred_check_branch
          %655 = sbr.rel (%p653) target = $region64
        $region63: #{tpu_custom_call.1} parent=23 // pred_region
          %p656 = scmp.lt.s32.totalorder %s37, 1
          %s657 = scalar_select %p656, %s37, 1
          %s658 = scalar_lea.vmem %s11, %s657
        $region64: #{tpu_custom_call.1} parent=23 // pred_fallthru
          _
        // Predicated region
        $region65: #{tpu_custom_call.1} parent=23 // pred_check
          %p659 = pneg %p373
        $region66: #{tpu_custom_call.1} parent=23 // pred_check_branch
          %661 = sbr.rel (%p659) target = $region68
        $region67: #{tpu_custom_call.1} parent=23 // pred_region
          %s662 = sand.u32 %s29, 1
          %s663 = scalar_lea.sflag [#allocation7], %s662
          %s664 = sand.u32 %s363, 1
          %s665 = smul.addr %s664, 16
          %s666 = scalar_lea.vmem [#allocation8], %s665
          %s668 = ssub.s32 256, 256
          %669 = vsyncadd %s663, %s668
          %s670 = smul.addr %s37, 4
          %s671 = smul.addr %s670, 64
          %s672 = scalar_lea.hbm %s12, %s671
          %s673 = sshll.u32 %s666, 4
          %s674 = int_to_ptr.vmem [resolvable:$true] %s673
          %679 = dma.hbm_to_vmem [thread:$0]  %s672, 256, %s674, %s663, 64, 64, 4
        $region68: #{tpu_custom_call.1} parent=23 // pred_fallthru
          _
        // Predicated region
        $region69: #{tpu_custom_call.1} parent=23 // pred_check
          %p680 = pneg %p399
        $region70: #{tpu_custom_call.1} parent=23 // pred_check_branch
          %682 = sbr.rel (%p680) target = $region72
        $region71: #{tpu_custom_call.1} parent=23 // pred_region
          %p683 = scmp.lt.s32.totalorder %s37, 1
          %s684 = scalar_select %p683, %s37, 1
          %s685 = scalar_lea.vmem %s13, %s684
        $region72: #{tpu_custom_call.1} parent=23 // pred_fallthru
          _
        // Predicated region
        $region73: #{tpu_custom_call.1} parent=23 // pred_check
          %p686 = pneg %p425
        $region74: #{tpu_custom_call.1} parent=23 // pred_check_branch
          %688 = sbr.rel (%p686) target = $region76
        $region75: #{tpu_custom_call.1} parent=23 // pred_region
          %p689 = scmp.lt.s32.totalorder %s37, 1
          %s690 = scalar_select %p689, %s37, 1
          %s691 = smul.addr %s690, 8
          %s692 = smul.addr %s691, 4
          %s693 = scalar_lea.vmem %s14, %s692
        $region76: #{tpu_custom_call.1} parent=23 // pred_fallthru
          _
        // Predicated region
        $region77: #{tpu_custom_call.1} parent=23 // pred_check
          %p694 = pneg %p451
        $region78: #{tpu_custom_call.1} parent=23 // pred_check_branch
          %696 = sbr.rel (%p694) target = $region80
        $region79: #{tpu_custom_call.1} parent=23 // pred_region
          %p697 = scmp.lt.s32.totalorder %s37, 1
          %s698 = scalar_select %p697, %s37, 1
          %s699 = scalar_lea.vmem %s15, %s698
        $region80: #{tpu_custom_call.1} parent=23 // pred_fallthru
          _
        // Predicated region
        $region81: #{tpu_custom_call.1} parent=23 // pred_check
          %p700 = pneg %p477
        $region82: #{tpu_custom_call.1} parent=23 // pred_check_branch
          %702 = sbr.rel (%p700) target = $region84
        $region83: #{tpu_custom_call.1} parent=23 // pred_region
          %p703 = scmp.lt.s32.totalorder %s37, 1
          %s704 = scalar_select %p703, %s37, 1
          %s705 = scalar_lea.vmem %s16, %s704
        $region84: #{tpu_custom_call.1} parent=23 // pred_fallthru
          _
        // Predicated region
        $region85: #{tpu_custom_call.1} parent=23 // pred_check
          %p706 = pneg %p503
        $region86: #{tpu_custom_call.1} parent=23 // pred_check_branch
          %708 = sbr.rel (%p706) target = $region88
        $region87: #{tpu_custom_call.1} parent=23 // pred_region
          %p709 = scmp.lt.s32.totalorder %s37, 1
          %s710 = scalar_select %p709, %s37, 1
          %s711 = scalar_lea.vmem %s17, %s710
        $region88: #{tpu_custom_call.1} parent=23 // pred_fallthru
          _
      $region24: #{tpu_custom_call.1} parent=5 // pred_fallthru
        _
      %p712 = scmp.le.s32.totalorder 1, %s29
      %p713 = scmp.lt.s32.totalorder %s29, 3
      %p714 = pnand %p712, %p713
      %p715 = pneg %p714
      // Predicated region
      $region89: #{tpu_custom_call.1} parent=5 // pred_check
        _
      $region90: #{tpu_custom_call.1} parent=5 // pred_check_branch
        %717 = sbr.rel (%p714) target = $region92
      $region91: #{tpu_custom_call.1} parent=5 // pred_region
        %s718 = ssub.s32 %s29, 1
        // Predicated region
        $region93: #{tpu_custom_call.1} parent=91 // pred_check
          %p719 = pneg %p67
        $region94: #{tpu_custom_call.1} parent=91 // pred_check_branch
          %721 = sbr.rel (%p719) target = $region96
        $region95: #{tpu_custom_call.1} parent=91 // pred_region
          %722 = dma.done [#allocation4], 256
        $region96: #{tpu_custom_call.1} parent=91 // pred_fallthru
          _
        %s723 = sand.u32 %s34, 1
        %s724 = scalar_lea.sflag [#allocation7], %s723
        %s725 = sand.u32 %s262, 1
        %s726 = smul.addr %s725, 16
        %s727 = scalar_lea.vmem [#allocation6], %s726
        // Predicated region
        $region97: #{tpu_custom_call.1} parent=91 // pred_check
          %p728 = pneg %p275
        $region98: #{tpu_custom_call.1} parent=91 // pred_check_branch
          %730 = sbr.rel (%p728) target = $region100
        $region99: #{tpu_custom_call.1} parent=91 // pred_region
          %731 = dma.done %s724, 256
        $region100: #{tpu_custom_call.1} parent=91 // pred_fallthru
          _
        %s732 = sand.u32 %s34, 1
        %s733 = scalar_lea.sflag [#allocation7], %s732
        %s734 = sand.u32 %s366, 1
        %s735 = smul.addr %s734, 16
        %s736 = scalar_lea.vmem [#allocation8], %s735
        // Predicated region
        $region101: #{tpu_custom_call.1} parent=91 // pred_check
          %p737 = pneg %p379
        $region102: #{tpu_custom_call.1} parent=91 // pred_check_branch
          %739 = sbr.rel (%p737) target = $region104
        $region103: #{tpu_custom_call.1} parent=91 // pred_region
          %740 = dma.done %s733, 256
        $region104: #{tpu_custom_call.1} parent=91 // pred_fallthru
          _
        %p741 = pneg %p67
        %p742 = pneg %p64
        %s743 = smul.u32 2, %s38
        %p744 = scmp.lt.s32.totalorder %s743, 1
        %s745 = scalar_select %p744, %s743, 1
        %s746 = scalar_lea.vmem %s1, %s745
        %p747 = pneg %p93
        %p748 = pneg %p90
        %p749 = scmp.lt.s32.totalorder %s39, 1
        %s750 = scalar_select %p749, %s39, 1
        %s751 = smul.addr %s750, 4
        %s752 = smul.addr %s751, 4
        %s753 = scalar_lea.vmem %s2, %s752
        %p754 = pneg %p119
        %p755 = pneg %p116
        %p756 = scmp.lt.s32.totalorder %s39, 1
        %s757 = scalar_select %p756, %s39, 1
        %s758 = scalar_lea.vmem %s3, %s757
        %p759 = pneg %p145
        %p760 = pneg %p142
        %p761 = scmp.lt.s32.totalorder %s39, 1
        %s762 = scalar_select %p761, %s39, 1
        %s763 = smul.addr %s762, 4
        %s764 = smul.addr %s763, 4
        %s765 = scalar_lea.vmem %s4, %s764
        %p766 = pneg %p171
        %p767 = pneg %p168
        %p768 = scmp.lt.s32.totalorder %s39, 1
        %s769 = scalar_select %p768, %s39, 1
        %s770 = scalar_lea.vmem %s5, %s769
        %p771 = pneg %p197
        %p772 = pneg %p194
        %p773 = scmp.lt.s32.totalorder %s39, 1
        %s774 = scalar_select %p773, %s39, 1
        %s775 = smul.addr %s774, 4
        %s776 = smul.addr %s775, 4
        %s777 = scalar_lea.vmem %s6, %s776
        %p778 = pneg %p223
        %p779 = pneg %p220
        %p780 = scmp.lt.s32.totalorder %s39, 1
        %s781 = scalar_select %p780, %s39, 1
        %s782 = scalar_lea.vmem %s7, %s781
        %p783 = pneg %p249
        %p784 = pneg %p246
        %s785 = sand.u32 %s34, 1
        %s786 = scalar_lea.sflag [#allocation7], %s785
        %s787 = sand.u32 %s262, 1
        %s788 = smul.addr %s787, 16
        %s789 = scalar_lea.vmem [#allocation6], %s788
        %p790 = pneg %p275
        %p791 = pneg %p272
        %p792 = scmp.lt.s32.totalorder %s39, 1
        %s793 = scalar_select %p792, %s39, 1
        %s794 = scalar_lea.vmem %s9, %s793
        %p795 = pneg %p301
        %p796 = pneg %p298
        %p797 = scmp.lt.s32.totalorder %s39, 1
        %s798 = scalar_select %p797, %s39, 1
        %s799 = scalar_lea.vmem %s10, %s798
        %p800 = pneg %p327
        %p801 = pneg %p324
        %p802 = scmp.lt.s32.totalorder %s39, 1
        %s803 = scalar_select %p802, %s39, 1
        %s804 = scalar_lea.vmem %s11, %s803
        %p805 = pneg %p353
        %p806 = pneg %p350
        %s807 = sand.u32 %s34, 1
        %s808 = scalar_lea.sflag [#allocation7], %s807
        %s809 = sand.u32 %s366, 1
        %s810 = smul.addr %s809, 16
        %s811 = scalar_lea.vmem [#allocation8], %s810
        %p812 = pneg %p379
        %p813 = pneg %p376
        %p814 = scmp.lt.s32.totalorder %s39, 1
        %s815 = scalar_select %p814, %s39, 1
        %s816 = scalar_lea.vmem %s13, %s815
        %p817 = pneg %p405
        %p818 = pneg %p402
        %p819 = scmp.lt.s32.totalorder %s39, 1
        %s820 = scalar_select %p819, %s39, 1
        %s821 = smul.addr %s820, 8
        %s822 = smul.addr %s821, 4
        %s823 = scalar_lea.vmem %s14, %s822
        %p824 = pneg %p431
        %p825 = pneg %p428
        %p826 = scmp.lt.s32.totalorder %s39, 1
        %s827 = scalar_select %p826, %s39, 1
        %s828 = scalar_lea.vmem %s15, %s827
        %p829 = pneg %p457
        %p830 = pneg %p454
        %p831 = scmp.lt.s32.totalorder %s39, 1
        %s832 = scalar_select %p831, %s39, 1
        %s833 = scalar_lea.vmem %s16, %s832
        %p834 = pneg %p483
        %p835 = pneg %p480
        %p836 = scmp.lt.s32.totalorder %s39, 1
        %s837 = scalar_select %p836, %s39, 1
        %s838 = scalar_lea.vmem %s17, %s837
        %p839 = pneg %p509
        %p840 = pneg %p506
        %p841 = pneg %p535
        %p842 = pneg %p532
        %s843 = smul.u32 2, %s38
        %s844 = smul.u32 2, %s38
        %p845 = scmp.lt.s32.totalorder %s844, 1
        %s846 = scalar_select %p845, %s844, 1
        %s847 = scalar_lea.vmem %s1, %s846
        %s848 = smul.u32 2, %s38
        %p849 = scmp.lt.s32.totalorder %s39, 1
        %s850 = scalar_select %p849, %s39, 1
        %s851 = smul.addr %s850, 4
        %s852 = smul.addr %s851, 4
        %s853 = scalar_lea.vmem %s2, %s852
        %p854 = scmp.lt.s32.totalorder %s39, 1
        %s855 = scalar_select %p854, %s39, 1
        %s856 = scalar_lea.vmem %s3, %s855
        %p857 = scmp.lt.s32.totalorder %s39, 1
        %s858 = scalar_select %p857, %s39, 1
        %s859 = smul.addr %s858, 4
        %s860 = smul.addr %s859, 4
        %s861 = scalar_lea.vmem %s4, %s860
        %p862 = scmp.lt.s32.totalorder %s39, 1
        %s863 = scalar_select %p862, %s39, 1
        %s864 = scalar_lea.vmem %s5, %s863
        %p865 = scmp.lt.s32.totalorder %s39, 1
        %s866 = scalar_select %p865, %s39, 1
        %s867 = smul.addr %s866, 4
        %s868 = smul.addr %s867, 4
        %s869 = scalar_lea.vmem %s6, %s868
        %p870 = scmp.lt.s32.totalorder %s39, 1
        %s871 = scalar_select %p870, %s39, 1
        %s872 = scalar_lea.vmem %s7, %s871
        %p873 = scmp.lt.s32.totalorder %s39, 1
        %s874 = scalar_select %p873, %s39, 1
        %s875 = scalar_lea.vmem %s9, %s874
        %p876 = scmp.lt.s32.totalorder %s39, 1
        %s877 = scalar_select %p876, %s39, 1
        %s878 = scalar_lea.vmem %s10, %s877
        %p879 = scmp.lt.s32.totalorder %s39, 1
        %s880 = scalar_select %p879, %s39, 1
        %s881 = scalar_lea.vmem %s11, %s880
        %p882 = scmp.lt.s32.totalorder %s39, 1
        %s883 = scalar_select %p882, %s39, 1
        %s884 = scalar_lea.vmem %s13, %s883
        %p885 = scmp.lt.s32.totalorder %s39, 1
        %s886 = scalar_select %p885, %s39, 1
        %s887 = smul.addr %s886, 8
        %s888 = smul.addr %s887, 4
        %s889 = scalar_lea.vmem %s14, %s888
        %p890 = scmp.lt.s32.totalorder %s39, 1
        %s891 = scalar_select %p890, %s39, 1
        %s892 = scalar_lea.vmem %s15, %s891
        %p893 = scmp.lt.s32.totalorder %s39, 1
        %s894 = scalar_select %p893, %s39, 1
        %s895 = scalar_lea.vmem %s16, %s894
        %p896 = scmp.lt.s32.totalorder %s39, 1
        %s897 = scalar_select %p896, %s39, 1
        %s898 = scalar_lea.vmem %s17, %s897
        %s899 = smul.u32 2, %s38
        %p901 = scmp.eq.s32.totalorder %s39, 0
        // Predicated region
        $region105: #{tpu_custom_call.1} parent=91 // pred_check
          %p902 = pneg %p901
        $region106: #{tpu_custom_call.1} parent=91 // pred_check_branch
          %904 = sbr.rel (%p902) target = $region108
        $region107: #{tpu_custom_call.1} parent=91 // pred_region
          %v905 = vld [vmem:[#allocation3] sm:$0xff]
          %v906 = vld [vmem:[#allocation3 + $0x8] sm:$0xff]
          %vm907 = vcmask 261120
          %908 = vst.msk [vmem:[#allocation2] sm:$0xff] %vm907, %v905
          %909 = vst.msk [vmem:[#allocation2 + $0x8] sm:$0xff] %vm907, %v906
        $region108: #{tpu_custom_call.1} parent=91 // pred_fallthru
          _
        %v910 = vld [vmem:[#allocation2] sm:$0xff]
        %v911 = vld [vmem:[#allocation2 + $0x8] sm:$0xff]
        %v912 = vpack.c.bf16 %v911, %v910
        %v913 = vld [vmem:[%s853] sm:$0xf]
        %v914 = vld [vmem:[%s853 + $0x4] sm:$0xf]
        %v915 = vld [vmem:[%s853 + $0x8] sm:$0xf]
        %v916 = vld [vmem:[%s853 + $0xc] sm:$0xf]
        %v917 = vld [vmem:[%s861] sm:$0xf]
        %v918 = vld [vmem:[%s861 + $0x4] sm:$0xf]
        %v919 = vld [vmem:[%s861 + $0x8] sm:$0xf]
        %v920 = vld [vmem:[%s861 + $0xc] sm:$0xf]
        %v921 = vld [vmem:[%s869] sm:$0xf]
        %v922 = vld [vmem:[%s869 + $0x4] sm:$0xf]
        %v923 = vld [vmem:[%s869 + $0x8] sm:$0xf]
        %v924 = vld [vmem:[%s869 + $0xc] sm:$0xf]
        %v925 = vld [vmem:[%s727] sm:$0xf]
        %v926 = vld [vmem:[%s727 + $0x4] sm:$0xf]
        %v927 = vld [vmem:[%s727 + $0x8] sm:$0xf]
        %v928 = vld [vmem:[%s727 + $0xc] sm:$0xf]
        %v929 = vld [vmem:[%s856] sm:$0x1]
        %v930 = vld [vmem:[%s864] sm:$0x1]
        %v931 = vld [vmem:[%s872] sm:$0x1]
        %v932 = vld [vmem:[%s875] sm:$0x1]
        %v934 = vlaneseq
        %v935 = vshrl.u32 %v934, 7
        %v936 = vsub.s32 0, %v935
        %v937 = vrot.slane %v929, %v936
        %v943 = vunpack.c.l.b16 %v913
        %v944 = vunpack.c.l.b16 %v914
        %v945 = vunpack.c.l.b16 %v915
        %v946 = vunpack.c.l.b16 %v916
        %v947 = vpack.c.b16 %v944, %v943
        %v948 = vpack.c.b16 %v946, %v945
        %vm951 = vcmask 261120
        %v953 = vsel %vm951, %v912, 0
        %955 = vmatprep.subr.bf16.mxu0 0
        %956 = vmatpush1.bf16.msra.mxu0 %v947
        %957 = vmatprep.subr.bf16.mxu0 0
        %958 = vmatpush1.bf16.msra.mxu0 %v948
        %959 = vmatprep.subr.bf16.mxu0 0
        %960 = vmatpush1.bf16.msra.mxu0 0
        %961 = vmatprep.subr.bf16.mxu0 0
        %962 = vmatpush1.bf16.msra.mxu0 0
        %963 = vmatprep.subr.bf16.mxu0 0
        %964 = vmatpush1.bf16.msra.mxu0 0
        %965 = vmatprep.subr.bf16.mxu0 0
        %966 = vmatpush1.bf16.msra.mxu0 0
        %967 = vmatprep.subr.bf16.mxu0 0
        %968 = vmatpush1.bf16.msra.mxu0 0
        %969 = vmatprep.subr.bf16.mxu0 0
        %970 = vmatpush1.bf16.msra.mxu0 0
        %971 = vmatprep.subr.bf16.mxu0 0
        %972 = vmatpush1.bf16.msra.mxu0 0
        %973 = vmatprep.subr.bf16.mxu0 0
        %974 = vmatpush1.bf16.msra.mxu0 0
        %975 = vmatprep.subr.bf16.mxu0 0
        %976 = vmatpush1.bf16.msra.mxu0 0
        %977 = vmatprep.subr.bf16.mxu0 0
        %978 = vmatpush1.bf16.msra.mxu0 0
        %979 = vmatprep.subr.bf16.mxu0 0
        %980 = vmatpush1.bf16.msra.mxu0 0
        %981 = vmatprep.subr.bf16.mxu0 0
        %982 = vmatpush1.bf16.msra.mxu0 0
        %983 = vmatprep.subr.bf16.mxu0 0
        %984 = vmatpush1.bf16.msra.mxu0 0
        %985 = vmatprep.subr.bf16.mxu0 0
        %986 = vmatpush1.bf16.msra.mxu0 0
        %987 = vmatprep.mubr.bf16.mxu0 0
        %988 = vmatmul.mubr.bf16.gmra.mrb[0].mxu0 %v953
        %v989 = vpop.f32.mrb[0].mxu0
        %v990 = vadd.f32 %v937, %v989
        %v991 = vpop.f32.mrb[0].mxu0
        %v992 = vpop.f32.mrb[0].mxu0
        %v993 = vadd.f32 %v937, %v992
        %v994 = vpop.f32.mrb[0].mxu0
        %995 = vdwg.mxu0
        %v997 = vlaneseq
        %v998 = vshrl.u32 %v997, 7
        %v999 = vsub.s32 0, %v998
        %v1000 = vrot.slane %v930, %v999
        %v1006 = vunpack.c.l.b16 %v917
        %v1007 = vunpack.c.l.b16 %v918
        %v1008 = vunpack.c.l.b16 %v919
        %v1009 = vunpack.c.l.b16 %v920
        %v1010 = vpack.c.b16 %v1007, %v1006
        %v1011 = vpack.c.b16 %v1009, %v1008
        %1014 = vmatprep.subr.bf16.mxu0 0
        %1015 = vmatpush1.bf16.msra.mxu0 %v1010
        %1016 = vmatprep.subr.bf16.mxu0 0
        %1017 = vmatpush1.bf16.msra.mxu0 %v1011
        %1018 = vmatprep.subr.bf16.mxu0 0
        %1019 = vmatpush1.bf16.msra.mxu0 0
        %1020 = vmatprep.subr.bf16.mxu0 0
        %1021 = vmatpush1.bf16.msra.mxu0 0
        %1022 = vmatprep.subr.bf16.mxu0 0
        %1023 = vmatpush1.bf16.msra.mxu0 0
        %1024 = vmatprep.subr.bf16.mxu0 0
        %1025 = vmatpush1.bf16.msra.mxu0 0
        %1026 = vmatprep.subr.bf16.mxu0 0
        %1027 = vmatpush1.bf16.msra.mxu0 0
        %1028 = vmatprep.subr.bf16.mxu0 0
        %1029 = vmatpush1.bf16.msra.mxu0 0
        %1030 = vmatprep.subr.bf16.mxu0 0
        %1031 = vmatpush1.bf16.msra.mxu0 0
        %1032 = vmatprep.subr.bf16.mxu0 0
        %1033 = vmatpush1.bf16.msra.mxu0 0
        %1034 = vmatprep.subr.bf16.mxu0 0
        %1035 = vmatpush1.bf16.msra.mxu0 0
        %1036 = vmatprep.subr.bf16.mxu0 0
        %1037 = vmatpush1.bf16.msra.mxu0 0
        %1038 = vmatprep.subr.bf16.mxu0 0
        %1039 = vmatpush1.bf16.msra.mxu0 0
        %1040 = vmatprep.subr.bf16.mxu0 0
        %1041 = vmatpush1.bf16.msra.mxu0 0
        %1042 = vmatprep.subr.bf16.mxu0 0
        %1043 = vmatpush1.bf16.msra.mxu0 0
        %1044 = vmatprep.subr.bf16.mxu0 0
        %1045 = vmatpush1.bf16.msra.mxu0 0
        %1046 = vmatprep.mubr.bf16.mxu0 0
        %1047 = vmatmul.mubr.bf16.gmra.mrb[0].mxu0 %v953
        %v1048 = vpop.f32.mrb[0].mxu0
        %v1049 = vadd.f32 %v1000, %v1048
        %v1050 = vpop.f32.mrb[0].mxu0
        %v1051 = vpop.f32.mrb[0].mxu0
        %v1052 = vadd.f32 %v1000, %v1051
        %v1053 = vpop.f32.mrb[0].mxu0
        %1054 = vdwg.mxu0
        %v1056 = vlaneseq
        %v1057 = vshrl.u32 %v1056, 7
        %v1058 = vsub.s32 0, %v1057
        %v1059 = vrot.slane %v931, %v1058
        %v1065 = vunpack.c.l.b16 %v921
        %v1066 = vunpack.c.l.b16 %v922
        %v1067 = vunpack.c.l.b16 %v923
        %v1068 = vunpack.c.l.b16 %v924
        %v1069 = vpack.c.b16 %v1066, %v1065
        %v1070 = vpack.c.b16 %v1068, %v1067
        %1073 = vmatprep.subr.bf16.mxu0 0
        %1074 = vmatpush1.bf16.msra.mxu0 %v1069
        %1075 = vmatprep.subr.bf16.mxu0 0
        %1076 = vmatpush1.bf16.msra.mxu0 %v1070
        %1077 = vmatprep.subr.bf16.mxu0 0
        %1078 = vmatpush1.bf16.msra.mxu0 0
        %1079 = vmatprep.subr.bf16.mxu0 0
        %1080 = vmatpush1.bf16.msra.mxu0 0
        %1081 = vmatprep.subr.bf16.mxu0 0
        %1082 = vmatpush1.bf16.msra.mxu0 0
        %1083 = vmatprep.subr.bf16.mxu0 0
        %1084 = vmatpush1.bf16.msra.mxu0 0
        %1085 = vmatprep.subr.bf16.mxu0 0
        %1086 = vmatpush1.bf16.msra.mxu0 0
        %1087 = vmatprep.subr.bf16.mxu0 0
        %1088 = vmatpush1.bf16.msra.mxu0 0
        %1089 = vmatprep.subr.bf16.mxu0 0
        %1090 = vmatpush1.bf16.msra.mxu0 0
        %1091 = vmatprep.subr.bf16.mxu0 0
        %1092 = vmatpush1.bf16.msra.mxu0 0
        %1093 = vmatprep.subr.bf16.mxu0 0
        %1094 = vmatpush1.bf16.msra.mxu0 0
        %1095 = vmatprep.subr.bf16.mxu0 0
        %1096 = vmatpush1.bf16.msra.mxu0 0
        %1097 = vmatprep.subr.bf16.mxu0 0
        %1098 = vmatpush1.bf16.msra.mxu0 0
        %1099 = vmatprep.subr.bf16.mxu0 0
        %1100 = vmatpush1.bf16.msra.mxu0 0
        %1101 = vmatprep.subr.bf16.mxu0 0
        %1102 = vmatpush1.bf16.msra.mxu0 0
        %1103 = vmatprep.subr.bf16.mxu0 0
        %1104 = vmatpush1.bf16.msra.mxu0 0
        %1105 = vmatprep.mubr.bf16.mxu0 0
        %1106 = vmatmul.mubr.bf16.gmra.mrb[0].mxu0 %v953
        %v1107 = vpop.f32.mrb[0].mxu0
        %v1108 = vadd.f32 %v1059, %v1107
        %v1109 = vpop.f32.mrb[0].mxu0
        %v1110 = vpop.f32.mrb[0].mxu0
        %v1111 = vadd.f32 %v1059, %v1110
        %v1112 = vpop.f32.mrb[0].mxu0
        %1113 = vdwg.mxu0
        %v1114 = vld [vmem:[%s847] sm:$0x1]
        %v1115 = vld [vmem:[%s847 + $0x1] sm:$0x1]
        %v1116 = vpack.c.bf16 %v990, %v990
        %v1117 = vpack.c.bf16 %v993, %v993
        %v1118 = vpack.c.bf16 %v1049, %v1049
        %v1119 = vpack.c.bf16 %v1052, %v1052
        %v1120 = vpack.c.bf16 %v1108, %v1108
        %v1121 = vpack.c.bf16 %v1111, %v1111
        %vm1122 = vcmask 130048
        %v1124 = vsel %vm1122, %v1116, 0
        %v1127 = vsel %vm1122, %v1118, 0
        %1129 = vmatprep.subr.bf16.mxu0 0
        %1130 = vmatpush1.bf16.xpose.msra.mxu0 %v1127
        %1131 = vmatprep.subr.bf16.mxu0 0
        %1132 = vmatpush1.bf16.xpose.msra.mxu0 0
        %1133 = vmatprep.subr.bf16.mxu0 0
        %1134 = vmatpush1.bf16.xpose.msra.mxu0 0
        %1135 = vmatprep.subr.bf16.mxu0 0
        %1136 = vmatpush1.bf16.xpose.msra.mxu0 0
        %1137 = vmatprep.subr.bf16.mxu0 0
        %1138 = vmatpush1.bf16.xpose.msra.mxu0 0
        %1139 = vmatprep.subr.bf16.mxu0 0
        %1140 = vmatpush1.bf16.xpose.msra.mxu0 0
        %1141 = vmatprep.subr.bf16.mxu0 0
        %1142 = vmatpush1.bf16.xpose.msra.mxu0 0
        %1143 = vmatprep.subr.bf16.mxu0 0
        %1144 = vmatpush1.bf16.xpose.msra.mxu0 0
        %1145 = vmatprep.subr.bf16.mxu0 0
        %1146 = vmatpush1.bf16.xpose.msra.mxu0 0
        %1147 = vmatprep.subr.bf16.mxu0 0
        %1148 = vmatpush1.bf16.xpose.msra.mxu0 0
        %1149 = vmatprep.subr.bf16.mxu0 0
        %1150 = vmatpush1.bf16.xpose.msra.mxu0 0
        %1151 = vmatprep.subr.bf16.mxu0 0
        %1152 = vmatpush1.bf16.xpose.msra.mxu0 0
        %1153 = vmatprep.subr.bf16.mxu0 0
        %1154 = vmatpush1.bf16.xpose.msra.mxu0 0
        %1155 = vmatprep.subr.bf16.mxu0 0
        %1156 = vmatpush1.bf16.xpose.msra.mxu0 0
        %1157 = vmatprep.subr.bf16.mxu0 0
        %1158 = vmatpush1.bf16.xpose.msra.mxu0 0
        %1159 = vmatprep.subr.bf16.mxu0 0
        %1160 = vmatpush1.bf16.xpose.msra.mxu0 0
        %1161 = vmatprep.mubr.bf16.mxu0 0
        %1162 = vmatmul.mubr.bf16.gmra.mrb[0].mxu0 %v1124
        %v1163 = vpop.f32.mrb[0].mxu0
        %v1164 = vadd.f32 0.0, %v1163
        %v1165 = vpop.f32.mrb[0].mxu0
        %v1166 = vpop.f32.mrb[0].mxu0
        %v1167 = vpop.f32.mrb[0].mxu0
        %1168 = vdwg.mxu0
        %v1170 = vsel %vm1122, %v1117, 0
        %v1173 = vsel %vm1122, %v1119, 0
        %1175 = vmatprep.subr.bf16.mxu0 0
        %1176 = vmatpush1.bf16.xpose.msra.mxu0 %v1173
        %1177 = vmatprep.subr.bf16.mxu0 0
        %1178 = vmatpush1.bf16.xpose.msra.mxu0 0
        %1179 = vmatprep.subr.bf16.mxu0 0
        %1180 = vmatpush1.bf16.xpose.msra.mxu0 0
        %1181 = vmatprep.subr.bf16.mxu0 0
        %1182 = vmatpush1.bf16.xpose.msra.mxu0 0
        %1183 = vmatprep.subr.bf16.mxu0 0
        %1184 = vmatpush1.bf16.xpose.msra.mxu0 0
        %1185 = vmatprep.subr.bf16.mxu0 0
        %1186 = vmatpush1.bf16.xpose.msra.mxu0 0
        %1187 = vmatprep.subr.bf16.mxu0 0
        %1188 = vmatpush1.bf16.xpose.msra.mxu0 0
        %1189 = vmatprep.subr.bf16.mxu0 0
        %1190 = vmatpush1.bf16.xpose.msra.mxu0 0
        %1191 = vmatprep.subr.bf16.mxu0 0
        %1192 = vmatpush1.bf16.xpose.msra.mxu0 0
        %1193 = vmatprep.subr.bf16.mxu0 0
        %1194 = vmatpush1.bf16.xpose.msra.mxu0 0
        %1195 = vmatprep.subr.bf16.mxu0 0
        %1196 = vmatpush1.bf16.xpose.msra.mxu0 0
        %1197 = vmatprep.subr.bf16.mxu0 0
        %1198 = vmatpush1.bf16.xpose.msra.mxu0 0
        %1199 = vmatprep.subr.bf16.mxu0 0
        %1200 = vmatpush1.bf16.xpose.msra.mxu0 0
        %1201 = vmatprep.subr.bf16.mxu0 0
        %1202 = vmatpush1.bf16.xpose.msra.mxu0 0
        %1203 = vmatprep.subr.bf16.mxu0 0
        %1204 = vmatpush1.bf16.xpose.msra.mxu0 0
        %1205 = vmatprep.subr.bf16.mxu0 0
        %1206 = vmatpush1.bf16.xpose.msra.mxu0 0
        %1207 = vmatprep.mubr.bf16.mxu0 0
        %1208 = vmatmul.mubr.bf16.gmra.mrb[0].mxu0 %v1170
        %v1209 = vpop.f32.mrb[0].mxu0
        %v1210 = vadd.f32 0.0, %v1209
        %v1211 = vpop.f32.mrb[0].mxu0
        %v1212 = vpop.f32.mrb[0].mxu0
        %v1213 = vpop.f32.mrb[0].mxu0
        %1214 = vdwg.mxu0
        %v1215 = vmul.f32 %v1164, 0.25
        %v1216 = vmul.f32 %v1210, 0.25
        %v1219 = vlaneseq
        %v1220 = vshrl.u32 %v1219, 7
        %v1221 = vsub.s32 0, %v1220
        %v1222 = vrot.slane %v1114, %v1221
        %v1223 = vlaneseq
        %v1224 = vshrl.u32 %v1223, 7
        %v1225 = vsub.s32 0, %v1224
        %v1226 = vrot.slane %v1115, %v1225
        %v1229 = vadd.f32 %v1215, %v1222
        %v1230 = vadd.f32 %v1216, %v1226
        %vm1231 = vcmask 64512
        %v1232 = vsel %vm1231, %v1229, -inf
        %1233 = vmax.xlane.f32.xlu0 %v1232
        %v1234 = vpop.xlane.xlu0 %1233
        %v1235 = vsel %vm1231, %v1230, -inf
        %1236 = vmax.xlane.f32.xlu0 %v1235
        %v1237 = vpop.xlane.xlu0 %1236
        %v1238 = vsub.f32 %v1229, %v1234
        %v1239 = vsub.f32 %v1230, %v1237
        %v1240 = vmul.f32 %v1238, 1.442695
        %v1241 = vpow.pop %v1240
        %v1242 = vmul.f32 %v1239, 1.442695
        %v1243 = vpow.pop %v1242
        %v1244 = vsel %vm1231, %v1241, 0.0
        %1245 = vadd.xlane.f32.xlu0 %v1244
        %v1246 = vpop.xlane.xlu0 %1245
        %v1247 = vsel %vm1231, %v1243, 0.0
        %1248 = vadd.xlane.f32.xlu0 %v1247
        %v1249 = vpop.xlane.xlu0 %1248
        %v1250 = vrcp.pop %v1246
        %v1251 = vrcp.pop %v1249
        %v1252 = vmul.f32 %v1241, %v1250
        %v1253 = vmul.f32 %v1243, %v1251
        %v1254 = vpack.c.bf16 %v1252, %v1252
        %v1255 = vpack.c.bf16 %v1253, %v1253
        %v1257 = vsel %vm1231, %v1254, 0
        %vm1259 = vcmask 1043456
        %v1261 = vsel %vm1259, %v1120, 0
        %1263 = vmatprep.subr.bf16.mxu0 0
        %1264 = vmatpush1.bf16.msra.mxu0 %v1261
        %1265 = vmatprep.subr.bf16.mxu0 0
        %1266 = vmatpush1.bf16.msra.mxu0 0
        %1267 = vmatprep.subr.bf16.mxu0 0
        %1268 = vmatpush1.bf16.msra.mxu0 0
        %1269 = vmatprep.subr.bf16.mxu0 0
        %1270 = vmatpush1.bf16.msra.mxu0 0
        %1271 = vmatprep.subr.bf16.mxu0 0
        %1272 = vmatpush1.bf16.msra.mxu0 0
        %1273 = vmatprep.subr.bf16.mxu0 0
        %1274 = vmatpush1.bf16.msra.mxu0 0
        %1275 = vmatprep.subr.bf16.mxu0 0
        %1276 = vmatpush1.bf16.msra.mxu0 0
        %1277 = vmatprep.subr.bf16.mxu0 0
        %1278 = vmatpush1.bf16.msra.mxu0 0
        %1279 = vmatprep.subr.bf16.mxu0 0
        %1280 = vmatpush1.bf16.msra.mxu0 0
        %1281 = vmatprep.subr.bf16.mxu0 0
        %1282 = vmatpush1.bf16.msra.mxu0 0
        %1283 = vmatprep.subr.bf16.mxu0 0
        %1284 = vmatpush1.bf16.msra.mxu0 0
        %1285 = vmatprep.subr.bf16.mxu0 0
        %1286 = vmatpush1.bf16.msra.mxu0 0
        %1287 = vmatprep.subr.bf16.mxu0 0
        %1288 = vmatpush1.bf16.msra.mxu0 0
        %1289 = vmatprep.subr.bf16.mxu0 0
        %1290 = vmatpush1.bf16.msra.mxu0 0
        %1291 = vmatprep.subr.bf16.mxu0 0
        %1292 = vmatpush1.bf16.msra.mxu0 0
        %1293 = vmatprep.subr.bf16.mxu0 0
        %1294 = vmatpush1.bf16.msra.mxu0 0
        %1295 = vmatprep.mubr.bf16.mxu0 0
        %1296 = vmatmul.mubr.bf16.gmra.mrb[0].mxu0 %v1257
        %v1297 = vpop.f32.mrb[0].mxu0
        %v1298 = vadd.f32 0.0, %v1297
        %v1299 = vpop.f32.mrb[0].mxu0
        %v1300 = vpop.f32.mrb[0].mxu0
        %v1301 = vpop.f32.mrb[0].mxu0
        %1302 = vdwg.mxu0
        %v1304 = vsel %vm1231, %v1255, 0
        %v1307 = vsel %vm1259, %v1121, 0
        %1309 = vmatprep.subr.bf16.mxu0 0
        %1310 = vmatpush1.bf16.msra.mxu0 %v1307
        %1311 = vmatprep.subr.bf16.mxu0 0
        %1312 = vmatpush1.bf16.msra.mxu0 0
        %1313 = vmatprep.subr.bf16.mxu0 0
        %1314 = vmatpush1.bf16.msra.mxu0 0
        %1315 = vmatprep.subr.bf16.mxu0 0
        %1316 = vmatpush1.bf16.msra.mxu0 0
        %1317 = vmatprep.subr.bf16.mxu0 0
        %1318 = vmatpush1.bf16.msra.mxu0 0
        %1319 = vmatprep.subr.bf16.mxu0 0
        %1320 = vmatpush1.bf16.msra.mxu0 0
        %1321 = vmatprep.subr.bf16.mxu0 0
        %1322 = vmatpush1.bf16.msra.mxu0 0
        %1323 = vmatprep.subr.bf16.mxu0 0
        %1324 = vmatpush1.bf16.msra.mxu0 0
        %1325 = vmatprep.subr.bf16.mxu0 0
        %1326 = vmatpush1.bf16.msra.mxu0 0
        %1327 = vmatprep.subr.bf16.mxu0 0
        %1328 = vmatpush1.bf16.msra.mxu0 0
        %1329 = vmatprep.subr.bf16.mxu0 0
        %1330 = vmatpush1.bf16.msra.mxu0 0
        %1331 = vmatprep.subr.bf16.mxu0 0
        %1332 = vmatpush1.bf16.msra.mxu0 0
        %1333 = vmatprep.subr.bf16.mxu0 0
        %1334 = vmatpush1.bf16.msra.mxu0 0
        %1335 = vmatprep.subr.bf16.mxu0 0
        %1336 = vmatpush1.bf16.msra.mxu0 0
        %1337 = vmatprep.subr.bf16.mxu0 0
        %1338 = vmatpush1.bf16.msra.mxu0 0
        %1339 = vmatprep.subr.bf16.mxu0 0
        %1340 = vmatpush1.bf16.msra.mxu0 0
        %1341 = vmatprep.mubr.bf16.mxu0 0
        %1342 = vmatmul.mubr.bf16.gmra.mrb[0].mxu0 %v1304
        %v1343 = vpop.f32.mrb[0].mxu0
        %v1344 = vadd.f32 0.0, %v1343
        %v1345 = vpop.f32.mrb[0].mxu0
        %v1346 = vpop.f32.mrb[0].mxu0
        %v1347 = vpop.f32.mrb[0].mxu0
        %1348 = vdwg.mxu0
        %v1349 = vpack.c.bf16 %v1344, %v1298
        %1351 = vrot.lane.b32.xlu0 %v1116, 112
        %v1352 = vpop.permute.xlu0 %1351
        %1354 = vrot.lane.b32.xlu0 %v1118, 112
        %v1355 = vpop.permute.xlu0 %1354
        %v1357 = vsel %vm1122, %v1352, 0
        %v1360 = vsel %vm1122, %v1355, 0
        %1362 = vmatprep.subr.bf16.mxu0 0
        %1363 = vmatpush1.bf16.xpose.msra.mxu0 %v1360
        %1364 = vmatprep.subr.bf16.mxu0 0
        %1365 = vmatpush1.bf16.xpose.msra.mxu0 0
        %1366 = vmatprep.subr.bf16.mxu0 0
        %1367 = vmatpush1.bf16.xpose.msra.mxu0 0
        %1368 = vmatprep.subr.bf16.mxu0 0
        %1369 = vmatpush1.bf16.xpose.msra.mxu0 0
        %1370 = vmatprep.subr.bf16.mxu0 0
        %1371 = vmatpush1.bf16.xpose.msra.mxu0 0
        %1372 = vmatprep.subr.bf16.mxu0 0
        %1373 = vmatpush1.bf16.xpose.msra.mxu0 0
        %1374 = vmatprep.subr.bf16.mxu0 0
        %1375 = vmatpush1.bf16.xpose.msra.mxu0 0
        %1376 = vmatprep.subr.bf16.mxu0 0
        %1377 = vmatpush1.bf16.xpose.msra.mxu0 0
        %1378 = vmatprep.subr.bf16.mxu0 0
        %1379 = vmatpush1.bf16.xpose.msra.mxu0 0
        %1380 = vmatprep.subr.bf16.mxu0 0
        %1381 = vmatpush1.bf16.xpose.msra.mxu0 0
        %1382 = vmatprep.subr.bf16.mxu0 0
        %1383 = vmatpush1.bf16.xpose.msra.mxu0 0
        %1384 = vmatprep.subr.bf16.mxu0 0
        %1385 = vmatpush1.bf16.xpose.msra.mxu0 0
        %1386 = vmatprep.subr.bf16.mxu0 0
        %1387 = vmatpush1.bf16.xpose.msra.mxu0 0
        %1388 = vmatprep.subr.bf16.mxu0 0
        %1389 = vmatpush1.bf16.xpose.msra.mxu0 0
        %1390 = vmatprep.subr.bf16.mxu0 0
        %1391 = vmatpush1.bf16.xpose.msra.mxu0 0
        %1392 = vmatprep.subr.bf16.mxu0 0
        %1393 = vmatpush1.bf16.xpose.msra.mxu0 0
        %1394 = vmatprep.mubr.bf16.mxu0 0
        %1395 = vmatmul.mubr.bf16.gmra.mrb[0].mxu0 %v1357
        %v1396 = vpop.f32.mrb[0].mxu0
        %v1397 = vadd.f32 0.0, %v1396
        %v1398 = vpop.f32.mrb[0].mxu0
        %v1399 = vpop.f32.mrb[0].mxu0
        %v1400 = vpop.f32.mrb[0].mxu0
        %1401 = vdwg.mxu0
        %1403 = vrot.lane.b32.xlu0 %v1117, 112
        %v1404 = vpop.permute.xlu0 %1403
        %1406 = vrot.lane.b32.xlu0 %v1119, 112
        %v1407 = vpop.permute.xlu0 %1406
        %v1409 = vsel %vm1122, %v1404, 0
        %v1412 = vsel %vm1122, %v1407, 0
        %1414 = vmatprep.subr.bf16.mxu0 0
        %1415 = vmatpush1.bf16.xpose.msra.mxu0 %v1412
        %1416 = vmatprep.subr.bf16.mxu0 0
        %1417 = vmatpush1.bf16.xpose.msra.mxu0 0
        %1418 = vmatprep.subr.bf16.mxu0 0
        %1419 = vmatpush1.bf16.xpose.msra.mxu0 0
        %1420 = vmatprep.subr.bf16.mxu0 0
        %1421 = vmatpush1.bf16.xpose.msra.mxu0 0
        %1422 = vmatprep.subr.bf16.mxu0 0
        %1423 = vmatpush1.bf16.xpose.msra.mxu0 0
        %1424 = vmatprep.subr.bf16.mxu0 0
        %1425 = vmatpush1.bf16.xpose.msra.mxu0 0
        %1426 = vmatprep.subr.bf16.mxu0 0
        %1427 = vmatpush1.bf16.xpose.msra.mxu0 0
        %1428 = vmatprep.subr.bf16.mxu0 0
        %1429 = vmatpush1.bf16.xpose.msra.mxu0 0
        %1430 = vmatprep.subr.bf16.mxu0 0
        %1431 = vmatpush1.bf16.xpose.msra.mxu0 0
        %1432 = vmatprep.subr.bf16.mxu0 0
        %1433 = vmatpush1.bf16.xpose.msra.mxu0 0
        %1434 = vmatprep.subr.bf16.mxu0 0
        %1435 = vmatpush1.bf16.xpose.msra.mxu0 0
        %1436 = vmatprep.subr.bf16.mxu0 0
        %1437 = vmatpush1.bf16.xpose.msra.mxu0 0
        %1438 = vmatprep.subr.bf16.mxu0 0
        %1439 = vmatpush1.bf16.xpose.msra.mxu0 0
        %1440 = vmatprep.subr.bf16.mxu0 0
        %1441 = vmatpush1.bf16.xpose.msra.mxu0 0
        %1442 = vmatprep.subr.bf16.mxu0 0
        %1443 = vmatpush1.bf16.xpose.msra.mxu0 0
        %1444 = vmatprep.subr.bf16.mxu0 0
        %1445 = vmatpush1.bf16.xpose.msra.mxu0 0
        %1446 = vmatprep.mubr.bf16.mxu0 0
        %1447 = vmatmul.mubr.bf16.gmra.mrb[0].mxu0 %v1409
        %v1448 = vpop.f32.mrb[0].mxu0
        %v1449 = vadd.f32 0.0, %v1448
        %v1450 = vpop.f32.mrb[0].mxu0
        %v1451 = vpop.f32.mrb[0].mxu0
        %v1452 = vpop.f32.mrb[0].mxu0
        %1453 = vdwg.mxu0
        %v1454 = vmul.f32 %v1397, 0.25
        %v1455 = vmul.f32 %v1449, 0.25
        %v1456 = vadd.f32 %v1454, %v1222
        %v1457 = vadd.f32 %v1455, %v1226
        %v1458 = vsel %vm1231, %v1456, -inf
        %1459 = vmax.xlane.f32.xlu0 %v1458
        %v1460 = vpop.xlane.xlu0 %1459
        %v1461 = vsel %vm1231, %v1457, -inf
        %1462 = vmax.xlane.f32.xlu0 %v1461
        %v1463 = vpop.xlane.xlu0 %1462
        %v1464 = vsub.f32 %v1456, %v1460
        %v1465 = vsub.f32 %v1457, %v1463
        %v1466 = vmul.f32 %v1464, 1.442695
        %v1467 = vpow.pop %v1466
        %v1468 = vmul.f32 %v1465, 1.442695
        %v1469 = vpow.pop %v1468
        %v1470 = vsel %vm1231, %v1467, 0.0
        %1471 = vadd.xlane.f32.xlu0 %v1470
        %v1472 = vpop.xlane.xlu0 %1471
        %v1473 = vsel %vm1231, %v1469, 0.0
        %1474 = vadd.xlane.f32.xlu0 %v1473
        %v1475 = vpop.xlane.xlu0 %1474
        %v1476 = vrcp.pop %v1472
        %v1477 = vrcp.pop %v1475
        %v1478 = vmul.f32 %v1467, %v1476
        %v1479 = vmul.f32 %v1469, %v1477
        %v1480 = vpack.c.bf16 %v1478, %v1478
        %v1481 = vpack.c.bf16 %v1479, %v1479
        %1483 = vrot.lane.b32.xlu0 %v1120, 112
        %v1484 = vpop.permute.xlu0 %1483
        %v1486 = vsel %vm1231, %v1480, 0
        %v1489 = vsel %vm1259, %v1484, 0
        %1491 = vmatprep.subr.bf16.mxu0 0
        %1492 = vmatpush1.bf16.msra.mxu0 %v1489
        %1493 = vmatprep.subr.bf16.mxu0 0
        %1494 = vmatpush1.bf16.msra.mxu0 0
        %1495 = vmatprep.subr.bf16.mxu0 0
        %1496 = vmatpush1.bf16.msra.mxu0 0
        %1497 = vmatprep.subr.bf16.mxu0 0
        %1498 = vmatpush1.bf16.msra.mxu0 0
        %1499 = vmatprep.subr.bf16.mxu0 0
        %1500 = vmatpush1.bf16.msra.mxu0 0
        %1501 = vmatprep.subr.bf16.mxu0 0
        %1502 = vmatpush1.bf16.msra.mxu0 0
        %1503 = vmatprep.subr.bf16.mxu0 0
        %1504 = vmatpush1.bf16.msra.mxu0 0
        %1505 = vmatprep.subr.bf16.mxu0 0
        %1506 = vmatpush1.bf16.msra.mxu0 0
        %1507 = vmatprep.subr.bf16.mxu0 0
        %1508 = vmatpush1.bf16.msra.mxu0 0
        %1509 = vmatprep.subr.bf16.mxu0 0
        %1510 = vmatpush1.bf16.msra.mxu0 0
        %1511 = vmatprep.subr.bf16.mxu0 0
        %1512 = vmatpush1.bf16.msra.mxu0 0
        %1513 = vmatprep.subr.bf16.mxu0 0
        %1514 = vmatpush1.bf16.msra.mxu0 0
        %1515 = vmatprep.subr.bf16.mxu0 0
        %1516 = vmatpush1.bf16.msra.mxu0 0
        %1517 = vmatprep.subr.bf16.mxu0 0
        %1518 = vmatpush1.bf16.msra.mxu0 0
        %1519 = vmatprep.subr.bf16.mxu0 0
        %1520 = vmatpush1.bf16.msra.mxu0 0
        %1521 = vmatprep.subr.bf16.mxu0 0
        %1522 = vmatpush1.bf16.msra.mxu0 0
        %1523 = vmatprep.mubr.bf16.mxu0 0
        %1524 = vmatmul.mubr.bf16.gmra.mrb[0].mxu0 %v1486
        %v1525 = vpop.f32.mrb[0].mxu0
        %v1526 = vadd.f32 0.0, %v1525
        %v1527 = vpop.f32.mrb[0].mxu0
        %v1528 = vpop.f32.mrb[0].mxu0
        %v1529 = vpop.f32.mrb[0].mxu0
        %1530 = vdwg.mxu0
        %1532 = vrot.lane.b32.xlu0 %v1121, 112
        %v1533 = vpop.permute.xlu0 %1532
        %v1535 = vsel %vm1231, %v1481, 0
        %v1538 = vsel %vm1259, %v1533, 0
        %1540 = vmatprep.subr.bf16.mxu0 0
        %1541 = vmatpush1.bf16.msra.mxu0 %v1538
        %1542 = vmatprep.subr.bf16.mxu0 0
        %1543 = vmatpush1.bf16.msra.mxu0 0
        %1544 = vmatprep.subr.bf16.mxu0 0
        %1545 = vmatpush1.bf16.msra.mxu0 0
        %1546 = vmatprep.subr.bf16.mxu0 0
        %1547 = vmatpush1.bf16.msra.mxu0 0
        %1548 = vmatprep.subr.bf16.mxu0 0
        %1549 = vmatpush1.bf16.msra.mxu0 0
        %1550 = vmatprep.subr.bf16.mxu0 0
        %1551 = vmatpush1.bf16.msra.mxu0 0
        %1552 = vmatprep.subr.bf16.mxu0 0
        %1553 = vmatpush1.bf16.msra.mxu0 0
        %1554 = vmatprep.subr.bf16.mxu0 0
        %1555 = vmatpush1.bf16.msra.mxu0 0
        %1556 = vmatprep.subr.bf16.mxu0 0
        %1557 = vmatpush1.bf16.msra.mxu0 0
        %1558 = vmatprep.subr.bf16.mxu0 0
        %1559 = vmatpush1.bf16.msra.mxu0 0
        %1560 = vmatprep.subr.bf16.mxu0 0
        %1561 = vmatpush1.bf16.msra.mxu0 0
        %1562 = vmatprep.subr.bf16.mxu0 0
        %1563 = vmatpush1.bf16.msra.mxu0 0
        %1564 = vmatprep.subr.bf16.mxu0 0
        %1565 = vmatpush1.bf16.msra.mxu0 0
        %1566 = vmatprep.subr.bf16.mxu0 0
        %1567 = vmatpush1.bf16.msra.mxu0 0
        %1568 = vmatprep.subr.bf16.mxu0 0
        %1569 = vmatpush1.bf16.msra.mxu0 0
        %1570 = vmatprep.subr.bf16.mxu0 0
        %1571 = vmatpush1.bf16.msra.mxu0 0
        %1572 = vmatprep.mubr.bf16.mxu0 0
        %1573 = vmatmul.mubr.bf16.gmra.mrb[0].mxu0 %v1535
        %v1574 = vpop.f32.mrb[0].mxu0
        %v1575 = vadd.f32 0.0, %v1574
        %v1576 = vpop.f32.mrb[0].mxu0
        %v1577 = vpop.f32.mrb[0].mxu0
        %v1578 = vpop.f32.mrb[0].mxu0
        %1579 = vdwg.mxu0
        %v1580 = vpack.c.bf16 %v1575, %v1526
        %v1583 = vunpack.c.l.b16 %v927
        %v1584 = vunpack.c.l.b16 %v928
        %v1585 = vpack.c.b16 %v1584, %v1583
        %v1588 = vsel %vm1122, %v1580, 0
        %1590 = vmatprep.subr.bf16.mxu0 0
        %1591 = vmatpush1.bf16.msra.mxu0 %v1585
        %1592 = vmatprep.subr.bf16.mxu0 0
        %1593 = vmatpush1.bf16.msra.mxu0 0
        %1594 = vmatprep.subr.bf16.mxu0 0
        %1595 = vmatpush1.bf16.msra.mxu0 0
        %1596 = vmatprep.subr.bf16.mxu0 0
        %1597 = vmatpush1.bf16.msra.mxu0 0
        %1598 = vmatprep.subr.bf16.mxu0 0
        %1599 = vmatpush1.bf16.msra.mxu0 0
        %1600 = vmatprep.subr.bf16.mxu0 0
        %1601 = vmatpush1.bf16.msra.mxu0 0
        %1602 = vmatprep.subr.bf16.mxu0 0
        %1603 = vmatpush1.bf16.msra.mxu0 0
        %1604 = vmatprep.subr.bf16.mxu0 0
        %1605 = vmatpush1.bf16.msra.mxu0 0
        %1606 = vmatprep.subr.bf16.mxu0 0
        %1607 = vmatpush1.bf16.msra.mxu0 0
        %1608 = vmatprep.subr.bf16.mxu0 0
        %1609 = vmatpush1.bf16.msra.mxu0 0
        %1610 = vmatprep.subr.bf16.mxu0 0
        %1611 = vmatpush1.bf16.msra.mxu0 0
        %1612 = vmatprep.subr.bf16.mxu0 0
        %1613 = vmatpush1.bf16.msra.mxu0 0
        %1614 = vmatprep.subr.bf16.mxu0 0
        %1615 = vmatpush1.bf16.msra.mxu0 0
        %1616 = vmatprep.subr.bf16.mxu0 0
        %1617 = vmatpush1.bf16.msra.mxu0 0
        %1618 = vmatprep.subr.bf16.mxu0 0
        %1619 = vmatpush1.bf16.msra.mxu0 0
        %1620 = vmatprep.subr.bf16.mxu0 0
        %1621 = vmatpush1.bf16.msra.mxu0 0
        %1622 = vmatprep.mubr.bf16.mxu0 0
        %1623 = vmatmul.mubr.bf16.gmra.mrb[0].mxu0 %v1588
        %v1624 = vpop.f32.mrb[0].mxu0
        %v1625 = vadd.f32 0.0, %v1624
        %v1626 = vpop.f32.mrb[0].mxu0
        %v1627 = vpop.f32.mrb[0].mxu0
        %v1628 = vadd.f32 0.0, %v1627
        %v1629 = vpop.f32.mrb[0].mxu0
        %1630 = vdwg.mxu0
        %v1633 = vunpack.c.l.b16 %v925
        %v1634 = vunpack.c.l.b16 %v926
        %v1635 = vpack.c.b16 %v1634, %v1633
        %v1638 = vsel %vm1122, %v1349, 0
        %1640 = vmatprep.subr.bf16.mxu0 0
        %1641 = vmatpush1.bf16.msra.mxu0 %v1635
        %1642 = vmatprep.subr.bf16.mxu0 0
        %1643 = vmatpush1.bf16.msra.mxu0 0
        %1644 = vmatprep.subr.bf16.mxu0 0
        %1645 = vmatpush1.bf16.msra.mxu0 0
        %1646 = vmatprep.subr.bf16.mxu0 0
        %1647 = vmatpush1.bf16.msra.mxu0 0
        %1648 = vmatprep.subr.bf16.mxu0 0
        %1649 = vmatpush1.bf16.msra.mxu0 0
        %1650 = vmatprep.subr.bf16.mxu0 0
        %1651 = vmatpush1.bf16.msra.mxu0 0
        %1652 = vmatprep.subr.bf16.mxu0 0
        %1653 = vmatpush1.bf16.msra.mxu0 0
        %1654 = vmatprep.subr.bf16.mxu0 0
        %1655 = vmatpush1.bf16.msra.mxu0 0
        %1656 = vmatprep.subr.bf16.mxu0 0
        %1657 = vmatpush1.bf16.msra.mxu0 0
        %1658 = vmatprep.subr.bf16.mxu0 0
        %1659 = vmatpush1.bf16.msra.mxu0 0
        %1660 = vmatprep.subr.bf16.mxu0 0
        %1661 = vmatpush1.bf16.msra.mxu0 0
        %1662 = vmatprep.subr.bf16.mxu0 0
        %1663 = vmatpush1.bf16.msra.mxu0 0
        %1664 = vmatprep.subr.bf16.mxu0 0
        %1665 = vmatpush1.bf16.msra.mxu0 0
        %1666 = vmatprep.subr.bf16.mxu0 0
        %1667 = vmatpush1.bf16.msra.mxu0 0
        %1668 = vmatprep.subr.bf16.mxu0 0
        %1669 = vmatpush1.bf16.msra.mxu0 0
        %1670 = vmatprep.subr.bf16.mxu0 0
        %1671 = vmatpush1.bf16.msra.mxu0 0
        %1672 = vmatprep.mubr.bf16.mxu0 0
        %1673 = vmatmul.mubr.bf16.gmra.mrb[0].mxu0 %v1638
        %v1674 = vpop.f32.mrb[0].mxu0
        %v1675 = vadd.f32 %v1625, %v1674
        %v1676 = vpop.f32.mrb[0].mxu0
        %v1677 = vpop.f32.mrb[0].mxu0
        %v1678 = vadd.f32 %v1628, %v1677
        %v1679 = vpop.f32.mrb[0].mxu0
        %1680 = vdwg.mxu0
        %v1682 = vlaneseq
        %v1683 = vshrl.u32 %v1682, 7
        %v1684 = vsub.s32 0, %v1683
        %v1685 = vrot.slane %v932, %v1684
        %v1687 = vadd.f32 %v1675, %v1685
        %v1688 = vadd.f32 %v1678, %v1685
        %v1689 = vadd.f32 %v910, %v1687
        %v1690 = vadd.f32 %v911, %v1688
        %v1691 = vsel %vm951, %v1689, 0.0
        %1692 = vadd.xlane.f32.xlu0 %v1691
        %v1693 = vpop.xlane.xlu0 %1692
        %v1694 = vsel %vm951, %v1690, 0.0
        %1695 = vadd.xlane.f32.xlu0 %v1694
        %v1696 = vpop.xlane.xlu0 %1695
        %v1697 = vrcp.pop 32.0
        %v1698 = vmul.f32 %v1693, %v1697
        %v1699 = vmul.f32 %v1696, %v1697
        %v1700 = vsub.f32 %v1689, %v1698
        %v1701 = vsub.f32 %v1690, %v1699
        %v1702 = vmul.f32 %v1700, %v1700
        %v1703 = vmul.f32 %v1701, %v1701
        %v1704 = vsel %vm951, %v1702, 0.0
        %1705 = vadd.xlane.f32.xlu0 %v1704
        %v1706 = vpop.xlane.xlu0 %1705
        %v1707 = vsel %vm951, %v1703, 0.0
        %1708 = vadd.xlane.f32.xlu0 %v1707
        %v1709 = vpop.xlane.xlu0 %1708
        %v1710 = vmul.f32 %v1706, %v1697
        %v1711 = vmul.f32 %v1709, %v1697
        %v1712 = vadd.f32 %v1710, 1e-12
        %v1713 = vadd.f32 %v1711, 1e-12
        %v1714 = vrsqrt.pop %v1712
        %v1715 = vrsqrt.pop %v1713
        %v1716 = vmul.f32 %v1700, %v1714
        %v1717 = vmul.f32 %v1701, %v1715
        %v1718 = vld [vmem:[%s878] sm:$0x1]
        %v1720 = vlaneseq
        %v1721 = vshrl.u32 %v1720, 7
        %v1722 = vsub.s32 0, %v1721
        %v1723 = vrot.slane %v1718, %v1722
        %v1725 = vmul.f32 %v1716, %v1723
        %v1726 = vmul.f32 %v1717, %v1723
        %v1727 = vld [vmem:[%s881] sm:$0x1]
        %v1729 = vlaneseq
        %v1730 = vshrl.u32 %v1729, 7
        %v1731 = vsub.s32 0, %v1730
        %v1732 = vrot.slane %v1727, %v1731
        %v1734 = vadd.f32 %v1725, %v1732
        %v1735 = vadd.f32 %v1726, %v1732
        %v1736 = vpack.c.bf16 %v1735, %v1734
        %v1737 = vld [vmem:[%s736] sm:$0xf]
        %v1738 = vld [vmem:[%s736 + $0x4] sm:$0xf]
        %v1739 = vld [vmem:[%s736 + $0x8] sm:$0xf]
        %v1740 = vld [vmem:[%s736 + $0xc] sm:$0xf]
        %v1741 = vld [vmem:[%s884] sm:$0x1]
        %v1743 = vlaneseq
        %v1744 = vshrl.u32 %v1743, 7
        %v1745 = vsub.s32 0, %v1744
        %v1746 = vrot.slane %v1741, %v1745
        %v1752 = vunpack.c.l.b16 %v1737
        %v1753 = vunpack.c.l.b16 %v1738
        %v1754 = vunpack.c.l.b16 %v1739
        %v1755 = vunpack.c.l.b16 %v1740
        %v1756 = vpack.c.b16 %v1753, %v1752
        %v1757 = vpack.c.b16 %v1755, %v1754
        %v1761 = vsel %vm951, %v1736, 0
        %1763 = vmatprep.subr.bf16.mxu0 0
        %1764 = vmatpush1.bf16.msra.mxu0 %v1756
        %1765 = vmatprep.subr.bf16.mxu0 0
        %1766 = vmatpush1.bf16.msra.mxu0 %v1757
        %1767 = vmatprep.subr.bf16.mxu0 0
        %1768 = vmatpush1.bf16.msra.mxu0 0
        %1769 = vmatprep.subr.bf16.mxu0 0
        %1770 = vmatpush1.bf16.msra.mxu0 0
        %1771 = vmatprep.subr.bf16.mxu0 0
        %1772 = vmatpush1.bf16.msra.mxu0 0
        %1773 = vmatprep.subr.bf16.mxu0 0
        %1774 = vmatpush1.bf16.msra.mxu0 0
        %1775 = vmatprep.subr.bf16.mxu0 0
        %1776 = vmatpush1.bf16.msra.mxu0 0
        %1777 = vmatprep.subr.bf16.mxu0 0
        %1778 = vmatpush1.bf16.msra.mxu0 0
        %1779 = vmatprep.subr.bf16.mxu0 0
        %1780 = vmatpush1.bf16.msra.mxu0 0
        %1781 = vmatprep.subr.bf16.mxu0 0
        %1782 = vmatpush1.bf16.msra.mxu0 0
        %1783 = vmatprep.subr.bf16.mxu0 0
        %1784 = vmatpush1.bf16.msra.mxu0 0
        %1785 = vmatprep.subr.bf16.mxu0 0
        %1786 = vmatpush1.bf16.msra.mxu0 0
        %1787 = vmatprep.subr.bf16.mxu0 0
        %1788 = vmatpush1.bf16.msra.mxu0 0
        %1789 = vmatprep.subr.bf16.mxu0 0
        %1790 = vmatpush1.bf16.msra.mxu0 0
        %1791 = vmatprep.subr.bf16.mxu0 0
        %1792 = vmatpush1.bf16.msra.mxu0 0
        %1793 = vmatprep.subr.bf16.mxu0 0
        %1794 = vmatpush1.bf16.msra.mxu0 0
        %1795 = vmatprep.mubr.bf16.mxu0 0
        %1796 = vmatmul.mubr.bf16.gmra.mrb[0].mxu0 %v1761
        %v1797 = vpop.f32.mrb[0].mxu0
        %v1798 = vadd.f32 %v1746, %v1797
        %v1799 = vpop.f32.mrb[0].mxu0
        %v1800 = vpop.f32.mrb[0].mxu0
        %v1801 = vadd.f32 %v1746, %v1800
        %v1802 = vpop.f32.mrb[0].mxu0
        %1803 = vdwg.mxu0
        %v1804 = vmax.f32 %v1798, 0.0
        %v1805 = vmax.f32 %v1801, 0.0
        %v1806 = vpack.c.bf16 %v1805, %v1804
        %v1807 = vld [vmem:[%s889] sm:$0xf]
        %v1808 = vld [vmem:[%s889 + $0x4] sm:$0xf]
        %v1809 = vld [vmem:[%s889 + $0x8] sm:$0xf]
        %v1810 = vld [vmem:[%s889 + $0xc] sm:$0xf]
        %v1811 = vld [vmem:[%s889 + $0x10] sm:$0xf]
        %v1812 = vld [vmem:[%s889 + $0x14] sm:$0xf]
        %v1813 = vld [vmem:[%s889 + $0x18] sm:$0xf]
        %v1814 = vld [vmem:[%s889 + $0x1c] sm:$0xf]
        %v1815 = vld [vmem:[%s892] sm:$0x1]
        %v1817 = vlaneseq
        %v1818 = vshrl.u32 %v1817, 7
        %v1819 = vsub.s32 0, %v1818
        %v1820 = vrot.slane %v1815, %v1819
        %v1830 = vunpack.c.l.b16 %v1807
        %v1831 = vunpack.c.l.b16 %v1808
        %v1832 = vunpack.c.l.b16 %v1809
        %v1833 = vunpack.c.l.b16 %v1810
        %v1834 = vunpack.c.l.b16 %v1811
        %v1835 = vunpack.c.l.b16 %v1812
        %v1836 = vunpack.c.l.b16 %v1813
        %v1837 = vunpack.c.l.b16 %v1814
        %v1838 = vpack.c.b16 %v1831, %v1830
        %v1839 = vpack.c.b16 %v1833, %v1832
        %v1840 = vpack.c.b16 %v1835, %v1834
        %v1841 = vpack.c.b16 %v1837, %v1836
        %vm1846 = vcmask 523264
        %v1848 = vsel %vm1846, %v1806, 0
        %1850 = vmatprep.subr.bf16.mxu0 0
        %1851 = vmatpush1.bf16.msra.mxu0 %v1838
        %1852 = vmatprep.subr.bf16.mxu0 0
        %1853 = vmatpush1.bf16.msra.mxu0 %v1839
        %1854 = vmatprep.subr.bf16.mxu0 0
        %1855 = vmatpush1.bf16.msra.mxu0 %v1840
        %1856 = vmatprep.subr.bf16.mxu0 0
        %1857 = vmatpush1.bf16.msra.mxu0 %v1841
        %1858 = vmatprep.subr.bf16.mxu0 0
        %1859 = vmatpush1.bf16.msra.mxu0 0
        %1860 = vmatprep.subr.bf16.mxu0 0
        %1861 = vmatpush1.bf16.msra.mxu0 0
        %1862 = vmatprep.subr.bf16.mxu0 0
        %1863 = vmatpush1.bf16.msra.mxu0 0
        %1864 = vmatprep.subr.bf16.mxu0 0
        %1865 = vmatpush1.bf16.msra.mxu0 0
        %1866 = vmatprep.subr.bf16.mxu0 0
        %1867 = vmatpush1.bf16.msra.mxu0 0
        %1868 = vmatprep.subr.bf16.mxu0 0
        %1869 = vmatpush1.bf16.msra.mxu0 0
        %1870 = vmatprep.subr.bf16.mxu0 0
        %1871 = vmatpush1.bf16.msra.mxu0 0
        %1872 = vmatprep.subr.bf16.mxu0 0
        %1873 = vmatpush1.bf16.msra.mxu0 0
        %1874 = vmatprep.subr.bf16.mxu0 0
        %1875 = vmatpush1.bf16.msra.mxu0 0
        %1876 = vmatprep.subr.bf16.mxu0 0
        %1877 = vmatpush1.bf16.msra.mxu0 0
        %1878 = vmatprep.subr.bf16.mxu0 0
        %1879 = vmatpush1.bf16.msra.mxu0 0
        %1880 = vmatprep.subr.bf16.mxu0 0
        %1881 = vmatpush1.bf16.msra.mxu0 0
        %1882 = vmatprep.mubr.bf16.mxu0 0
        %1883 = vmatmul.mubr.bf16.gmra.mrb[0].mxu0 %v1848
        %v1884 = vpop.f32.mrb[0].mxu0
        %v1885 = vadd.f32 %v1820, %v1884
        %v1886 = vpop.f32.mrb[0].mxu0
        %v1887 = vpop.f32.mrb[0].mxu0
        %v1888 = vadd.f32 %v1820, %v1887
        %v1889 = vpop.f32.mrb[0].mxu0
        %1890 = vdwg.mxu0
        %v1891 = vadd.f32 %v1885, %v1734
        %v1892 = vadd.f32 %v1888, %v1735
        %v1893 = vsel %vm951, %v1891, 0.0
        %1894 = vadd.xlane.f32.xlu0 %v1893
        %v1895 = vpop.xlane.xlu0 %1894
        %v1896 = vsel %vm951, %v1892, 0.0
        %1897 = vadd.xlane.f32.xlu0 %v1896
        %v1898 = vpop.xlane.xlu0 %1897
        %v1899 = vmul.f32 %v1895, %v1697
        %v1900 = vmul.f32 %v1898, %v1697
        %v1901 = vsub.f32 %v1891, %v1899
        %v1902 = vsub.f32 %v1892, %v1900
        %v1903 = vmul.f32 %v1901, %v1901
        %v1904 = vmul.f32 %v1902, %v1902
        %v1905 = vsel %vm951, %v1903, 0.0
        %1906 = vadd.xlane.f32.xlu0 %v1905
        %v1907 = vpop.xlane.xlu0 %1906
        %v1908 = vsel %vm951, %v1904, 0.0
        %1909 = vadd.xlane.f32.xlu0 %v1908
        %v1910 = vpop.xlane.xlu0 %1909
        %v1911 = vmul.f32 %v1907, %v1697
        %v1912 = vmul.f32 %v1910, %v1697
        %v1913 = vadd.f32 %v1911, 1e-12
        %v1914 = vadd.f32 %v1912, 1e-12
        %v1915 = vrsqrt.pop %v1913
        %v1916 = vrsqrt.pop %v1914
        %v1917 = vmul.f32 %v1901, %v1915
        %v1918 = vmul.f32 %v1902, %v1916
        %v1919 = vld [vmem:[%s895] sm:$0x1]
        %v1921 = vlaneseq
        %v1922 = vshrl.u32 %v1921, 7
        %v1923 = vsub.s32 0, %v1922
        %v1924 = vrot.slane %v1919, %v1923
        %v1926 = vmul.f32 %v1917, %v1924
        %v1927 = vmul.f32 %v1918, %v1924
        %v1928 = vld [vmem:[%s898] sm:$0x1]
        %v1930 = vlaneseq
        %v1931 = vshrl.u32 %v1930, 7
        %v1932 = vsub.s32 0, %v1931
        %v1933 = vrot.slane %v1928, %v1932
        %v1935 = vadd.f32 %v1926, %v1933
        %v1936 = vadd.f32 %v1927, %v1933
        %1937 = vst.msk [vmem:[#allocation2] sm:$0xff] %vm951, %v1935
        %1938 = vst.msk [vmem:[#allocation2 + $0x8] sm:$0xff] %vm951, %v1936
        %p1939 = scmp.eq.s32.totalorder %s39, 1
        // Predicated region
        $region109: #{tpu_custom_call.1} parent=91 // pred_check
          %p1940 = pneg %p1939
        $region110: #{tpu_custom_call.1} parent=91 // pred_check_branch
          %1942 = sbr.rel (%p1940) target = $region112
        $region111: #{tpu_custom_call.1} parent=91 // pred_region
          %1943 = vst.msk [vmem:[#allocation9] sm:$0xff] %vm951, %v1935
          %1944 = vst.msk [vmem:[#allocation9 + $0x8] sm:$0xff] %vm951, %v1936
        $region112: #{tpu_custom_call.1} parent=91 // pred_fallthru
          _
        // Predicated region
        $region113: #{tpu_custom_call.1} parent=91 // pred_check
          %p1945 = pneg %p532
        $region114: #{tpu_custom_call.1} parent=91 // pred_check_branch
          %1947 = sbr.rel (%p1945) target = $region116
        $region115: #{tpu_custom_call.1} parent=91 // pred_region
          %s1948 = smul.u32 2, %s38
          %s1950 = ssub.s32 256, 256
          %1951 = vsyncadd [#allocation5], %s1950
          %s1952 = smul.addr %s1948, 128
          %s1953 = scalar_lea.hbm %s18, %s1952
          %s1954 = sshll.u32 [#allocation9], 4
          %s1955 = int_to_ptr.vmem [resolvable:$true] %s1954
          %1960 = dma.vmem_to_hbm [thread:$0]  %s1955, 256, %s1953, [#allocation5], 128, 128, 8
        $region116: #{tpu_custom_call.1} parent=91 // pred_fallthru
          _
        // Predicated region
        $region117: #{tpu_custom_call.1} parent=91 // pred_check
          %p1961 = pneg %p532
        $region118: #{tpu_custom_call.1} parent=91 // pred_check_branch
          %1963 = sbr.rel (%p1961) target = $region120
        $region119: #{tpu_custom_call.1} parent=91 // pred_region
          %1964 = dma.done [#allocation5], 256
        $region120: #{tpu_custom_call.1} parent=91 // pred_fallthru
          _
      $region92: #{tpu_custom_call.1} parent=5 // pred_fallthru
        _
      %p1965 = scmp.le.s32.totalorder 2, %s29
      // Predicated region
      $region121: #{tpu_custom_call.1} parent=5 // pred_check
        %p1966 = pneg %p1965
      $region122: #{tpu_custom_call.1} parent=5 // pred_check_branch
        %1968 = sbr.rel (%p1966) target = $region124
      $region123: #{tpu_custom_call.1} parent=5 // pred_region
        %s1969 = ssub.s32 %s29, 2
      $region124: #{tpu_custom_call.1} parent=5 // pred_fallthru
        _
    $region6: #{tpu_custom_call.1} parent=1 // loop_footer
      %s33 = sadd.s32 1, %s29
    $region7: #{tpu_custom_call.1} parent=1 // loop_footer_branch
      %28 = sbr.rel target = $region3
    $region8: #{tpu_custom_call.1} parent=1 // loop_exit
      _
    %1970 = vsyncpa [#allocation4], 1
    %s1971 = scalar_lea.sflag [#allocation4], 1
    %1972 = vsyncpa %s1971, 1
    %1973 = vsyncpa [#allocation7], 1
    %s1974 = scalar_lea.sflag [#allocation7], 1
    %1975 = vsyncpa %s1974, 1
    %1976 = vsyncpa [#allocation5], 1
    %s1977 = scalar_lea.sflag [#allocation5], 1
    %1978 = vsyncpa %s1977, 1

</llo_original>
